<compile_context>
chip_gen: v6e
topology: v6e:2x2x1
jax: 0.10.0
libtpu: 0.0.40
codegen_flags: <defaults>
</compile_context>

<pallas_src>
import functools

import jax
import jax.numpy as jnp
from jax.experimental import pallas as pl
from jax.experimental.pallas import tpu as pltpu

N_EXPERTS = 2
LANE = 128


def _round_up(x, m):
    return ((x + m - 1) // m) * m


# --------------------------------------------------------------------------- #
# Kernel
# --------------------------------------------------------------------------- #
def moe_kernel(x_ref, w1_ref, b1_ref, w2_ref, b2_ref, w3_ref, b3_ref, o_ref):
    hid2_cat = w3_ref.shape[0]      # 2 * (hidden_dim // 2)  == 128
    out_pad = o_ref.shape[1]        # padded output width    == 128

    x = x_ref[...]                  # (TB, D) f32

    # ---- Fused layer 1: gate fc1 (padded) + expert0 fc1 + expert1 fc1 ------
    h1 = jnp.maximum(
        jnp.dot(x, w1_ref[...], preferred_element_type=jnp.float32) + b1_ref[...],
        0.0)                                            # (TB, 384)

    # ---- Fused layer 2: [expert0 fc2 | expert1 fc2 | gate logit-diff slab] --
    s2 = jnp.dot(h1, w2_ref[...], preferred_element_type=jnp.float32) + b2_ref[...]
    h2 = jnp.maximum(s2[:, :hid2_cat], 0.0)             # (TB, 128)  experts' h2
    # 2-way softmax == sigmoid(logit0 - logit1); slab is already lane-replicated.
    g0 = 1.0 / (1.0 + jnp.exp(-s2[:, hid2_cat:]))       # (TB, 128)  gate weight e0

    # ---- Fused layer 3: block-diagonal, both experts padded to 128 lanes ----
    s3 = jnp.dot(h2, w3_ref[...], preferred_element_type=jnp.float32) + b3_ref[...]
    # Weighted combine, lane-dense store.
    o_ref[...] = g0 * s3[:, :out_pad] + (1.0 - g0) * s3[:, out_pad:]


# --------------------------------------------------------------------------- #
# Parameter init (PyTorch nn.Linear-style, unfused) and fusion
# --------------------------------------------------------------------------- #
def init_params(key, input_dim, hidden_dim, out_dim):
    """Weights stored as (in, out); biases (1, out) / (E, 1, out)."""
    gate_h = hidden_dim // 2
    hid2 = hidden_dim // 2

    def linear(k, fan_in, fan_out, stack=None):
        bound = 1.0 / jnp.sqrt(float(fan_in))
        kw, kb = jax.random.split(k)
        wshape = (fan_in, fan_out) if stack is None else (stack, fan_in, fan_out)
        bshape = (1, fan_out) if stack is None else (stack, 1, fan_out)
        w = jax.random.uniform(kw, wshape, jnp.float32, -bound, bound)
        b = jax.random.uniform(kb, bshape, jnp.float32, -bound, bound)
        return w, b

    keys = jax.random.split(key, 5)
    wg1, bg1 = linear(keys[0], input_dim, gate_h)
    wg2, bg2 = linear(keys[1], gate_h, N_EXPERTS)
    w1, b1 = linear(keys[2], input_dim, hidden_dim, stack=N_EXPERTS)
    w2, b2 = linear(keys[3], hidden_dim, hid2, stack=N_EXPERTS)
    w3, b3 = linear(keys[4], hid2, out_dim, stack=N_EXPERTS)
    return dict(wg1=wg1, bg1=bg1, wg2=wg2, bg2=bg2,
                w1=w1, b1=b1, w2=w2, b2=b2, w3=w3, b3=b3)


def fuse_params(params):
    """Build lane-dense fused / block-structured weights (done once, outside kernel)."""
    f32 = jnp.float32
    wg1, bg1 = params["wg1"], params["bg1"]
    wg2, bg2 = params["wg2"], params["bg2"]
    w1, b1 = params["w1"], params["b1"]
    w2, b2 = params["w2"], params["b2"]
    w3, b3 = params["w3"], params["b3"]

    D = wg1.shape[0]
    gate_h = wg1.shape[1]
    hidden = w1.shape[2]
    hid2 = w2.shape[2]
    out_dim = w3.shape[2]

    gate_pad = _round_up(gate_h, LANE)          # 128
    out_pad = _round_up(max(out_dim, LANE), LANE)  # 128 (lane-dense output)
    n1 = gate_pad + N_EXPERTS * hidden          # 384
    hid2_cat = N_EXPERTS * hid2                 # 128
    n2 = hid2_cat + out_pad                     # 256 (expert h2 slab + gate slab)
    n3 = N_EXPERTS * out_pad                    # 256

    # ---- Layer 1: [gate fc1 (zero-padded to 128) | expert0 fc1 | expert1 fc1]
    w1c = jnp.zeros((D, n1), f32)
    w1c = w1c.at[:, :gate_h].set(wg1)
    w1c = w1c.at[:, gate_pad:gate_pad + hidden].set(w1[0])
    w1c = w1c.at[:, gate_pad + hidden:].set(w1[1])
    b1c = jnp.zeros((1, n1), f32)
    b1c = b1c.at[:, :gate_h].set(bg1)
    b1c = b1c.at[0, gate_pad:gate_pad + hidden].set(b1[0, 0])
    b1c = b1c.at[0, gate_pad + hidden:].set(b1[1, 0])

    # ---- Layer 2: block structure
    #   rows [0,gate_pad)         -> cols [hid2_cat, n2): gate logit-diff, lane-replicated
    #   rows [gate_pad, +hidden)  -> cols [0, hid2):      expert0 fc2
    #   rows [gate_pad+hidden, .) -> cols [hid2, 2*hid2): expert1 fc2
    wg_diff = wg2[:, 0] - wg2[:, 1]             # (gate_h,)
    bg_diff = bg2[0, 0] - bg2[0, 1]
    w2c = jnp.zeros((n1, n2), f32)
    w2c = w2c.at[:gate_h, hid2_cat:].set(
        jnp.broadcast_to(wg_diff[:, None], (gate_h, out_pad)))
    w2c = w2c.at[gate_pad:gate_pad + hidden, :hid2].set(w2[0])
    w2c = w2c.at[gate_pad + hidden:, hid2:hid2_cat].set(w2[1])
    b2c = jnp.zeros((1, n2), f32)
    b2c = b2c.at[0, :hid2].set(b2[0, 0])
    b2c = b2c.at[0, hid2:hid2_cat].set(b2[1, 0])
    b2c = b2c.at[0, hid2_cat:].set(bg_diff)

    # ---- Layer 3: block-diagonal, each expert's output zero-padded to out_pad
    w3c = jnp.zeros((hid2_cat, n3), f32)
    w3c = w3c.at[:hid2, :out_dim].set(w3[0])
    w3c = w3c.at[hid2:, out_pad:out_pad + out_dim].set(w3[1])
    b3c = jnp.zeros((1, n3), f32)
    b3c = b3c.at[0, :out_dim].set(b3[0, 0])
    b3c = b3c.at[0, out_pad:out_pad + out_dim].set(b3[1, 0])

    fused = dict(w1c=w1c, b1c=b1c, w2c=w2c, b2c=b2c, w3c=w3c, b3c=b3c)
    meta = dict(out_dim=out_dim, out_pad=out_pad)
    return fused, meta


# --------------------------------------------------------------------------- #
# Wrapper
# --------------------------------------------------------------------------- #
@functools.partial(jax.jit, static_argnames=("out_dim", "out_pad", "block_b"))
def moe_forward(x_nchw, fused, *, out_dim, out_pad, block_b=256):
    B = x_nchw.shape[0]
    x = x_nchw.astype(jnp.float32).reshape(B, -1)       # == torch x.view(B, -1)

    w1c, b1c = fused["w1c"], fused["b1c"]
    w2c, b2c = fused["w2c"], fused["b2c"]
    w3c, b3c = fused["w3c"], fused["b3c"]
    D, n1 = w1c.shape
    n2 = w2c.shape[1]
    hid2_cat, n3 = w3c.shape

    # Batch tiling: pad to at least the (8,) sublane floor, tile with a grid.
    TB = min(block_b, _round_up(B, 8))
    B_pad = _round_up(B, TB)
    if B_pad != B:
        x = jnp.pad(x, ((0, B_pad - B), (0, 0)))
    grid = (B_pad // TB,)

    const = lambda i: (0, 0)     # weights: same block every step -> stay VMEM-resident
    out_padded = pl.pallas_call(
        moe_kernel,
        out_shape=jax.ShapeDtypeStruct((B_pad, out_pad), jnp.float32),
        grid_spec=pltpu.PrefetchScalarGridSpec(
            num_scalar_prefetch=0,
            grid=grid,
            in_specs=[
                pl.BlockSpec((TB, D), lambda i: (i, 0)),   # x: tiled over batch
                pl.BlockSpec((D, n1), const),
                pl.BlockSpec((1, n1), const),
                pl.BlockSpec((n1, n2), const),
                pl.BlockSpec((1, n2), const),
                pl.BlockSpec((hid2_cat, n3), const),
                pl.BlockSpec((1, n3), const),
            ],
            out_specs=pl.BlockSpec((TB, out_pad), lambda i: (i, 0)),
        ),
        compiler_params=pltpu.CompilerParams(
            dimension_semantics=("parallel",),             # megacore sharding on v7x
        ),
    )(x, w1c, b1c, w2c, b2c, w3c, b3c)

    return out_padded[:B, :out_dim]


# --------------------------------------------------------------------------- #
# Pure-JAX reference (original, unfused semantics) for verification
# --------------------------------------------------------------------------- #
def moe_reference(x_nchw, params):
    x = x_nchw.astype(jnp.float32).reshape(x_nchw.shape[0], -1)
    g = jax.nn.relu(x @ params["wg1"] + params["bg1"])
    gate_w = jax.nn.softmax(g @ params["wg2"] + params["bg2"], axis=-1)
    outs = []
    for ei in range(N_EXPERTS):
        h1 = jax.nn.relu(x @ params["w1"][ei] + params["b1"][ei])
        h2 = jax.nn.relu(h1 @ params["w2"][ei] + params["b2"][ei])
        outs.append(h2 @ params["w3"][ei] + params["b3"][ei])
    expert_outs = jnp.stack(outs, axis=1)                       # (B, E, out)
    return jnp.sum(expert_outs * gate_w[:, :, None], axis=1)    # (B, out)


if __name__ == "__main__":
    # Shapes consistent with Net(in_shape=(4, 16, 16), out_shape=(10,)):
    #   input_dim = 4*16*16 = 1024
    #   hidden_dim = min(128, max(32, 1024 // 8)) = 128, gate hidden = 64
    B, C, H, W = 2, 4, 16, 16
    OUT_DIM = 10
    input_dim = C * H * W
    hidden_dim = min(128, max(32, input_dim // 8))

    key = jax.random.PRNGKey(0)
    k_x, k_p = jax.random.split(key)
    x = jax.random.normal(k_x, (B, C, H, W), dtype=jnp.float32)
    params = init_params(k_p, input_dim, hidden_dim, OUT_DIM)

    # TODO(synk): for memory-bound serving batches, cast fused weights to bf16
    # (keep f32 accumulation) — kept f32 here so the numeric check stays exact.
    fused, meta = fuse_params(params)

    out = moe_forward(x, fused, out_dim=meta["out_dim"], out_pad=meta["out_pad"])
    out = jax.block_until_ready(out)

    ref = moe_reference(x, params)
    assert out.shape == (B, OUT_DIM)
    assert jnp.allclose(out, ref, atol=1e-4, rtol=1e-4), "Pallas output mismatch vs JAX reference"

    print("KERNEL_OK")
</pallas_src>

<mosaic_0001>
module attributes {stable_mosaic.version = 11 : i64} {
  func.func @moe_kernel(%arg0: i32, %arg1: memref<8x1024xf32, #tpu.memory_space<vmem>>, %arg2: memref<1024x384xf32, #tpu.memory_space<vmem>>, %arg3: memref<1x384xf32, #tpu.memory_space<vmem>>, %arg4: memref<384x256xf32, #tpu.memory_space<vmem>>, %arg5: memref<1x256xf32, #tpu.memory_space<vmem>>, %arg6: memref<128x256xf32, #tpu.memory_space<vmem>>, %arg7: memref<1x256xf32, #tpu.memory_space<vmem>>, %arg8: memref<8x128xf32, #tpu.memory_space<vmem>>) attributes {dimension_semantics = [#tpu.dimension_semantics<parallel>], iteration_bounds = array<i64: 1>, scalar_prefetch = 0 : i64, scratch_operands = 0 : i64, tpu.core_type = #tpu.core_type<tc>, window_params = [{transform_indices = @transform_0, window_bounds = array<i64: 8, 1024>}, {pipeline_mode = #tpu.pipeline_mode<synchronous>, transform_indices = @transform_1, window_bounds = array<i64: 1024, 384>}, {pipeline_mode = #tpu.pipeline_mode<synchronous>, transform_indices = @transform_2, window_bounds = array<i64: 1, 384>}, {pipeline_mode = #tpu.pipeline_mode<synchronous>, transform_indices = @transform_3, window_bounds = array<i64: 384, 256>}, {pipeline_mode = #tpu.pipeline_mode<synchronous>, transform_indices = @transform_4, window_bounds = array<i64: 1, 256>}, {pipeline_mode = #tpu.pipeline_mode<synchronous>, transform_indices = @transform_5, window_bounds = array<i64: 128, 256>}, {pipeline_mode = #tpu.pipeline_mode<synchronous>, transform_indices = @transform_6, window_bounds = array<i64: 1, 256>}, {transform_indices = @transform_7, window_bounds = array<i64: 8, 128>}]} {
    %c0 = arith.constant 0 : index
    %c0_0 = arith.constant 0 : index
    %0 = vector.load %arg1[%c0, %c0_0] : memref<8x1024xf32, #tpu.memory_space<vmem>>, vector<8x1024xf32>
    %c0_1 = arith.constant 0 : index
    %c0_2 = arith.constant 0 : index
    %1 = vector.load %arg2[%c0_1, %c0_2] : memref<1024x384xf32, #tpu.memory_space<vmem>>, vector<1024x384xf32>
    %cst = arith.constant dense<0.000000e+00> : vector<8x384xf32>
    %2 = tpu.matmul %0, %1, %cst {dimension_numbers = #tpu.dot_dimension_numbers<[1], [0], [0], [1], [0, 0, 1, 1], [], []>} : vector<8x1024xf32>, vector<1024x384xf32>, vector<8x384xf32> -> vector<8x384xf32>
    %c0_3 = arith.constant 0 : index
    %c0_4 = arith.constant 0 : index
    %3 = vector.load %arg3[%c0_3, %c0_4] : memref<1x384xf32, #tpu.memory_space<vmem>>, vector<1x384xf32>
    %4 = vector.broadcast %3 : vector<1x384xf32> to vector<8x384xf32>
    %5 = arith.addf %2, %4 : vector<8x384xf32>
    %cst_5 = arith.constant 0.000000e+00 : f32
    %6 = vector.broadcast %cst_5 : f32 to vector<8x384xf32>
    %7 = arith.maximumf %5, %6 : vector<8x384xf32>
    %c0_6 = arith.constant 0 : index
    %c0_7 = arith.constant 0 : index
    %8 = vector.load %arg4[%c0_6, %c0_7] : memref<384x256xf32, #tpu.memory_space<vmem>>, vector<384x256xf32>
    %cst_8 = arith.constant dense<0.000000e+00> : vector<8x256xf32>
    %9 = tpu.matmul %7, %8, %cst_8 {dimension_numbers = #tpu.dot_dimension_numbers<[1], [0], [0], [1], [0, 0, 1, 1], [], []>} : vector<8x384xf32>, vector<384x256xf32>, vector<8x256xf32> -> vector<8x256xf32>
    %c0_9 = arith.constant 0 : index
    %c0_10 = arith.constant 0 : index
    %10 = vector.load %arg5[%c0_9, %c0_10] : memref<1x256xf32, #tpu.memory_space<vmem>>, vector<1x256xf32>
    %11 = vector.broadcast %10 : vector<1x256xf32> to vector<8x256xf32>
    %12 = arith.addf %9, %11 : vector<8x256xf32>
    %13 = vector.extract_strided_slice %12 {offsets = [0, 0], sizes = [8, 128], strides = [1, 1]} : vector<8x256xf32> to vector<8x128xf32>
    %cst_11 = arith.constant 0.000000e+00 : f32
    %14 = vector.broadcast %cst_11 : f32 to vector<8x128xf32>
    %15 = arith.maximumf %13, %14 : vector<8x128xf32>
    %16 = vector.extract_strided_slice %12 {offsets = [0, 128], sizes = [8, 128], strides = [1, 1]} : vector<8x256xf32> to vector<8x128xf32>
    %cst_12 = arith.constant 0.000000e+00 : f32
    %17 = vector.broadcast %cst_12 : f32 to vector<8x128xf32>
    %18 = arith.subf %17, %16 : vector<8x128xf32>
    %19 = math.exp %18 : vector<8x128xf32>
    %cst_13 = arith.constant 1.000000e+00 : f32
    %20 = vector.broadcast %cst_13 : f32 to vector<8x128xf32>
    %21 = arith.addf %20, %19 : vector<8x128xf32>
    %cst_14 = arith.constant 1.000000e+00 : f32
    %22 = vector.broadcast %cst_14 : f32 to vector<8x128xf32>
    %23 = arith.divf %22, %21 : vector<8x128xf32>
    %c0_15 = arith.constant 0 : index
    %c0_16 = arith.constant 0 : index
    %24 = vector.load %arg6[%c0_15, %c0_16] : memref<128x256xf32, #tpu.memory_space<vmem>>, vector<128x256xf32>
    %cst_17 = arith.constant dense<0.000000e+00> : vector<8x256xf32>
    %25 = tpu.matmul %15, %24, %cst_17 {dimension_numbers = #tpu.dot_dimension_numbers<[1], [0], [0], [1], [0, 0, 1, 1], [], []>} : vector<8x128xf32>, vector<128x256xf32>, vector<8x256xf32> -> vector<8x256xf32>
    %c0_18 = arith.constant 0 : index
    %c0_19 = arith.constant 0 : index
    %26 = vector.load %arg7[%c0_18, %c0_19] : memref<1x256xf32, #tpu.memory_space<vmem>>, vector<1x256xf32>
    %27 = vector.broadcast %26 : vector<1x256xf32> to vector<8x256xf32>
    %28 = arith.addf %25, %27 : vector<8x256xf32>
    %29 = vector.extract_strided_slice %28 {offsets = [0, 0], sizes = [8, 128], strides = [1, 1]} : vector<8x256xf32> to vector<8x128xf32>
    %30 = arith.mulf %23, %29 : vector<8x128xf32>
    %cst_20 = arith.constant 1.000000e+00 : f32
    %31 = vector.broadcast %cst_20 : f32 to vector<8x128xf32>
    %32 = arith.subf %31, %23 : vector<8x128xf32>
    %33 = vector.extract_strided_slice %28 {offsets = [0, 128], sizes = [8, 128], strides = [1, 1]} : vector<8x256xf32> to vector<8x128xf32>
    %34 = arith.mulf %32, %33 : vector<8x128xf32>
    %35 = arith.addf %30, %34 : vector<8x128xf32>
    %c0_21 = arith.constant 0 : index
    %c0_22 = arith.constant 0 : index
    %36 = vector.load %arg8[%c0_21, %c0_22] : memref<8x128xf32, #tpu.memory_space<vmem>>, vector<8x128xf32>
    tpu.vector_store %arg8[%c0_21, %c0_22], %35 {strides = array<i32>} : memref<8x128xf32, #tpu.memory_space<vmem>>, vector<8x128xf32>,
    return
  }
  func.func @transform_0(%arg0: i32) -> (i32, i32) {
    %c0_i32 = arith.constant 0 : i32
    %c0_i32_0 = arith.constant 0 : i32
    return %arg0, %c0_i32 : i32, i32
  }
  func.func @transform_1(%arg0: i32) -> (i32, i32) {
    %c0_i32 = arith.constant 0 : i32
    %c0_i32_0 = arith.constant 0 : i32
    %c0_i32_1 = arith.constant 0 : i32
    return %c0_i32, %c0_i32_0 : i32, i32
  }
  func.func @transform_2(%arg0: i32) -> (i32, i32) {
    %c0_i32 = arith.constant 0 : i32
    %c0_i32_0 = arith.constant 0 : i32
    %c0_i32_1 = arith.constant 0 : i32
    return %c0_i32, %c0_i32_0 : i32, i32
  }
  func.func @transform_3(%arg0: i32) -> (i32, i32) {
    %c0_i32 = arith.constant 0 : i32
    %c0_i32_0 = arith.constant 0 : i32
    %c0_i32_1 = arith.constant 0 : i32
    return %c0_i32, %c0_i32_0 : i32, i32
  }
  func.func @transform_4(%arg0: i32) -> (i32, i32) {
    %c0_i32 = arith.constant 0 : i32
    %c0_i32_0 = arith.constant 0 : i32
    %c0_i32_1 = arith.constant 0 : i32
    return %c0_i32, %c0_i32_0 : i32, i32
  }
  func.func @transform_5(%arg0: i32) -> (i32, i32) {
    %c0_i32 = arith.constant 0 : i32
    %c0_i32_0 = arith.constant 0 : i32
    %c0_i32_1 = arith.constant 0 : i32
    return %c0_i32, %c0_i32_0 : i32, i32
  }
  func.func @transform_6(%arg0: i32) -> (i32, i32) {
    %c0_i32 = arith.constant 0 : i32
    %c0_i32_0 = arith.constant 0 : i32
    %c0_i32_1 = arith.constant 0 : i32
    return %c0_i32, %c0_i32_0 : i32, i32
  }
  func.func @transform_7(%arg0: i32) -> (i32, i32) {
    %c0_i32 = arith.constant 0 : i32
    %c0_i32_0 = arith.constant 0 : i32
    return %arg0, %c0_i32 : i32, i32
  }
}

</mosaic_0001>

<llo_original>
// kernel: moe_forward.1
$region0: #{moe_forward.1}
  #allocation0 [shape = 'u32[]', space=smem, size = 0x4, offset = 0x4, fixed_abs, tag = 'smem constant byte address 0x4 - core index']
  #allocation1 [shape = 'u32[144,128]{1,0:T(1,128)}', space=vmem, size = 0x12000, scoped, tag = 'internal scratch']
  %s0 = inlined_call_operand.vmem [shape: f32[8,1024], index: 0, kind: input, shape index: {}]
  %s1 = inlined_call_operand.hbm [shape: f32[1024,384], index: 1, kind: input, shape index: {}]
  %s2 = inlined_call_operand.hbm [shape: f32[1,384], index: 2, kind: input, shape index: {}]
  %s3 = inlined_call_operand.hbm [shape: f32[384,256], index: 3, kind: input, shape index: {}]
  %s4 = inlined_call_operand.hbm [shape: f32[1,256], index: 4, kind: input, shape index: {}]
  %s5 = inlined_call_operand.hbm [shape: f32[128,256], index: 5, kind: input, shape index: {}]
  %s6 = inlined_call_operand.hbm [shape: f32[1,256], index: 6, kind: input, shape index: {}]
  %s7 = inlined_call_operand.vmem [shape: f32[8,128], index: 7, kind: output, shape index: {}]
  %s8 = sld [smem:[#allocation0]]
  $region62: #{moe_forward.1} parent=0
    _
  %s10 = ssub.s32 1, %s8
  %s11 = scalar_select 0, %s10, %s8
  $region1: #{moe_forward.1} parent=0
    #allocation2 [shape = 'u8[1572864]{0}', space=vmem, size = 0x180000, scoped, tag = 'input window, operand 1, single buffered']
    #allocation3 [shape = 's32[1]{0}', space=sflag, size = 0x4, scoped, tag = 'scoped memory for moe_forward.1']
    #allocation4 [shape = 'u8[1536]{0}', space=vmem, size = 0x800, scoped, tag = 'input window, operand 2, single buffered']
    #allocation5 [shape = 's32[1]{0}', space=sflag, size = 0x4, scoped, tag = 'scoped memory for moe_forward.1']
    #allocation6 [shape = 'u8[393216]{0}', space=vmem, size = 0x60000, scoped, tag = 'input window, operand 3, single buffered']
    #allocation7 [shape = 'u8[1024]{0}', space=vmem, size = 0x400, scoped, tag = 'input window, operand 4, single buffered']
    #allocation8 [shape = 's32[1]{0}', space=sflag, size = 0x4, scoped, tag = 'scoped memory for moe_forward.1']
    #allocation9 [shape = 'u8[131072]{0}', space=vmem, size = 0x20000, scoped, tag = 'input window, operand 5, single buffered']
    #allocation10 [shape = 'u8[1024]{0}', space=vmem, size = 0x400, scoped, tag = 'input window, operand 6, single buffered']
    #allocation11 [shape = 's32[1]{0}', space=sflag, size = 0x4, scoped, tag = 'scoped memory for moe_forward.1']
    %12 = vsyncpa [#allocation3], 0
    %13 = vsyncpa [#allocation5], 0
    %14 = vsyncpa [#allocation8], 0
    %15 = vsyncpa [#allocation11], 0
    // Predicated region
    $region2: #{moe_forward.1} parent=1 // pred_check
      _
    $region3: #{moe_forward.1} parent=1 // pred_check_branch
      %17 = sbr.rel (0) target = $region5
    $region4: #{moe_forward.1} parent=1 // pred_region
      _
    $region5: #{moe_forward.1} parent=1 // pred_fallthru
      _
    // Predicated region
    $region6: #{moe_forward.1} parent=1 // pred_check
      _
    $region7: #{moe_forward.1} parent=1 // pred_check_branch
      %19 = sbr.rel (0) target = $region9
    $region8: #{moe_forward.1} parent=1 // pred_region
      %s21 = ssub.s32 49152, 49152
      %22 = vsyncadd [#allocation3], %s21
      %s23 = sshll.u32 [#allocation2], 4
      %s24 = int_to_ptr.vmem [resolvable:$true] %s23
      %29 = dma.hbm_to_vmem [thread:$0]  %s1, 49152, %s24, [#allocation3], 384, 384, 24
    $region9: #{moe_forward.1} parent=1 // pred_fallthru
      _
    // Predicated region
    $region10: #{moe_forward.1} parent=1 // pred_check
      _
    $region11: #{moe_forward.1} parent=1 // pred_check_branch
      %31 = sbr.rel (0) target = $region13
    $region12: #{moe_forward.1} parent=1 // pred_region
      %s33 = ssub.s32 48, 48
      %34 = vsyncadd [#allocation5], %s33
      %s36 = sshll.u32 [#allocation4], 4
      %s37 = int_to_ptr.vmem [resolvable:$true] %s36
      %39 = dma.hbm_to_vmem [thread:$0]  %s2, 48, %s37, [#allocation5]
    $region13: #{moe_forward.1} parent=1 // pred_fallthru
      _
    // Predicated region
    $region14: #{moe_forward.1} parent=1 // pred_check
      _
    $region15: #{moe_forward.1} parent=1 // pred_check_branch
      %41 = sbr.rel (0) target = $region17
    $region16: #{moe_forward.1} parent=1 // pred_region
      %s43 = ssub.s32 12288, 12288
      %44 = vsyncadd [#allocation5], %s43
      %s45 = sshll.u32 [#allocation6], 4
      %s46 = int_to_ptr.vmem [resolvable:$true] %s45
      %51 = dma.hbm_to_vmem [thread:$0]  %s3, 12288, %s46, [#allocation5], 256, 256, 16
    $region17: #{moe_forward.1} parent=1 // pred_fallthru
      _
    // Predicated region
    $region18: #{moe_forward.1} parent=1 // pred_check
      _
    $region19: #{moe_forward.1} parent=1 // pred_check_branch
      %53 = sbr.rel (0) target = $region21
    $region20: #{moe_forward.1} parent=1 // pred_region
      %s55 = ssub.s32 32, 32
      %56 = vsyncadd [#allocation8], %s55
      %s58 = sshll.u32 [#allocation7], 4
      %s59 = int_to_ptr.vmem [resolvable:$true] %s58
      %61 = dma.hbm_to_vmem [thread:$0]  %s4, 32, %s59, [#allocation8]
    $region21: #{moe_forward.1} parent=1 // pred_fallthru
      _
    // Predicated region
    $region22: #{moe_forward.1} parent=1 // pred_check
      _
    $region23: #{moe_forward.1} parent=1 // pred_check_branch
      %63 = sbr.rel (0) target = $region25
    $region24: #{moe_forward.1} parent=1 // pred_region
      %s65 = ssub.s32 4096, 4096
      %66 = vsyncadd [#allocation8], %s65
      %s67 = sshll.u32 [#allocation9], 4
      %s68 = int_to_ptr.vmem [resolvable:$true] %s67
      %73 = dma.hbm_to_vmem [thread:$0]  %s5, 4096, %s68, [#allocation8], 256, 256, 16
    $region25: #{moe_forward.1} parent=1 // pred_fallthru
      _
    // Predicated region
    $region26: #{moe_forward.1} parent=1 // pred_check
      _
    $region27: #{moe_forward.1} parent=1 // pred_check_branch
      %75 = sbr.rel (0) target = $region29
    $region28: #{moe_forward.1} parent=1 // pred_region
      %s77 = ssub.s32 32, 32
      %78 = vsyncadd [#allocation11], %s77
      %s80 = sshll.u32 [#allocation10], 4
      %s81 = int_to_ptr.vmem [resolvable:$true] %s80
      %83 = dma.hbm_to_vmem [thread:$0]  %s6, 32, %s81, [#allocation11]
    $region29: #{moe_forward.1} parent=1 // pred_fallthru
      _
    // Predicated region
    $region30: #{moe_forward.1} parent=1 // pred_check
      _
    $region31: #{moe_forward.1} parent=1 // pred_check_branch
      %85 = sbr.rel (0) target = $region33
    $region32: #{moe_forward.1} parent=1 // pred_region
      %86 = dma.done [#allocation3], 49152
    $region33: #{moe_forward.1} parent=1 // pred_fallthru
      _
    // Predicated region
    $region34: #{moe_forward.1} parent=1 // pred_check
      _
    $region35: #{moe_forward.1} parent=1 // pred_check_branch
      %88 = sbr.rel (0) target = $region37
    $region36: #{moe_forward.1} parent=1 // pred_region
      %89 = dma.done [#allocation5], 48
    $region37: #{moe_forward.1} parent=1 // pred_fallthru
      _
    // Predicated region
    $region38: #{moe_forward.1} parent=1 // pred_check
      _
    $region39: #{moe_forward.1} parent=1 // pred_check_branch
      %91 = sbr.rel (0) target = $region41
    $region40: #{moe_forward.1} parent=1 // pred_region
      %92 = dma.done [#allocation5], 12288
    $region41: #{moe_forward.1} parent=1 // pred_fallthru
      _
    // Predicated region
    $region42: #{moe_forward.1} parent=1 // pred_check
      _
    $region43: #{moe_forward.1} parent=1 // pred_check_branch
      %94 = sbr.rel (0) target = $region45
    $region44: #{moe_forward.1} parent=1 // pred_region
      %95 = dma.done [#allocation8], 32
    $region45: #{moe_forward.1} parent=1 // pred_fallthru
      _
    // Predicated region
    $region46: #{moe_forward.1} parent=1 // pred_check
      _
    $region47: #{moe_forward.1} parent=1 // pred_check_branch
      %97 = sbr.rel (0) target = $region49
    $region48: #{moe_forward.1} parent=1 // pred_region
      %98 = dma.done [#allocation8], 4096
    $region49: #{moe_forward.1} parent=1 // pred_fallthru
      _
    // Predicated region
    $region50: #{moe_forward.1} parent=1 // pred_check
      _
    $region51: #{moe_forward.1} parent=1 // pred_check_branch
      %100 = sbr.rel (0) target = $region53
    $region52: #{moe_forward.1} parent=1 // pred_region
      %101 = dma.done [#allocation11], 32
    $region53: #{moe_forward.1} parent=1 // pred_fallthru
      _
    %v102 = vld [vmem:[%s0] sm:$0xff]
    %v103 = vld [vmem:[%s0 + $0x8] sm:$0xff]
    %v104 = vld [vmem:[%s0 + $0x10] sm:$0xff]
    %v105 = vld [vmem:[%s0 + $0x18] sm:$0xff]
    %v106 = vld [vmem:[%s0 + $0x20] sm:$0xff]
    %v107 = vld [vmem:[%s0 + $0x28] sm:$0xff]
    %v108 = vld [vmem:[%s0 + $0x30] sm:$0xff]
    %v109 = vld [vmem:[%s0 + $0x38] sm:$0xff]
    %v110 = vld [vmem:[#allocation2] sm:$0xff]
    %v111 = vld [vmem:[#allocation2 + $0x8] sm:$0xff]
    %v112 = vld [vmem:[#allocation2 + $0x10] sm:$0xff]
    %v113 = vld [vmem:[#allocation2 + $0x18] sm:$0xff]
    %v114 = vld [vmem:[#allocation2 + $0x20] sm:$0xff]
    %v115 = vld [vmem:[#allocation2 + $0x28] sm:$0xff]
    %v116 = vld [vmem:[#allocation2 + $0x30] sm:$0xff]
    %v117 = vld [vmem:[#allocation2 + $0x38] sm:$0xff]
    %v118 = vld [vmem:[#allocation2 + $0x40] sm:$0xff]
    %v119 = vld [vmem:[#allocation2 + $0x48] sm:$0xff]
    %v120 = vld [vmem:[#allocation2 + $0x50] sm:$0xff]
    %v121 = vld [vmem:[#allocation2 + $0x58] sm:$0xff]
    %v122 = vld [vmem:[#allocation2 + $0x60] sm:$0xff]
    %v123 = vld [vmem:[#allocation2 + $0x68] sm:$0xff]
    %v124 = vld [vmem:[#allocation2 + $0x70] sm:$0xff]
    %v125 = vld [vmem:[#allocation2 + $0x78] sm:$0xff]
    %v126 = vld [vmem:[#allocation2 + $0x80] sm:$0xff]
    %v127 = vld [vmem:[#allocation2 + $0x88] sm:$0xff]
    %v128 = vld [vmem:[#allocation2 + $0x90] sm:$0xff]
    %v129 = vld [vmem:[#allocation2 + $0x98] sm:$0xff]
    %v130 = vld [vmem:[#allocation2 + $0xa0] sm:$0xff]
    %v131 = vld [vmem:[#allocation2 + $0xa8] sm:$0xff]
    %v132 = vld [vmem:[#allocation2 + $0xb0] sm:$0xff]
    %v133 = vld [vmem:[#allocation2 + $0xb8] sm:$0xff]
    %v134 = vld [vmem:[#allocation2 + $0xc0] sm:$0xff]
    %v135 = vld [vmem:[#allocation2 + $0xc8] sm:$0xff]
    %v136 = vld [vmem:[#allocation2 + $0xd0] sm:$0xff]
    %v137 = vld [vmem:[#allocation2 + $0xd8] sm:$0xff]
    %v138 = vld [vmem:[#allocation2 + $0xe0] sm:$0xff]
    %v139 = vld [vmem:[#allocation2 + $0xe8] sm:$0xff]
    %v140 = vld [vmem:[#allocation2 + $0xf0] sm:$0xff]
    %v141 = vld [vmem:[#allocation2 + $0xf8] sm:$0xff]
    %v142 = vld [vmem:[#allocation2 + $0x100] sm:$0xff]
    %v143 = vld [vmem:[#allocation2 + $0x108] sm:$0xff]
    %v144 = vld [vmem:[#allocation2 + $0x110] sm:$0xff]
    %v145 = vld [vmem:[#allocation2 + $0x118] sm:$0xff]
    %v146 = vld [vmem:[#allocation2 + $0x120] sm:$0xff]
    %v147 = vld [vmem:[#allocation2 + $0x128] sm:$0xff]
    %v148 = vld [vmem:[#allocation2 + $0x130] sm:$0xff]
    %v149 = vld [vmem:[#allocation2 + $0x138] sm:$0xff]
    %v150 = vld [vmem:[#allocation2 + $0x140] sm:$0xff]
    %v151 = vld [vmem:[#allocation2 + $0x148] sm:$0xff]
    %v152 = vld [vmem:[#allocation2 + $0x150] sm:$0xff]
    %v153 = vld [vmem:[#allocation2 + $0x158] sm:$0xff]
    %v154 = vld [vmem:[#allocation2 + $0x160] sm:$0xff]
    %v155 = vld [vmem:[#allocation2 + $0x168] sm:$0xff]
    %v156 = vld [vmem:[#allocation2 + $0x170] sm:$0xff]
    %v157 = vld [vmem:[#allocation2 + $0x178] sm:$0xff]
    %v158 = vld [vmem:[#allocation2 + $0x180] sm:$0xff]
    %v159 = vld [vmem:[#allocation2 + $0x188] sm:$0xff]
    %v160 = vld [vmem:[#allocation2 + $0x190] sm:$0xff]
    %v161 = vld [vmem:[#allocation2 + $0x198] sm:$0xff]
    %v162 = vld [vmem:[#allocation2 + $0x1a0] sm:$0xff]
    %v163 = vld [vmem:[#allocation2 + $0x1a8] sm:$0xff]
    %v164 = vld [vmem:[#allocation2 + $0x1b0] sm:$0xff]
    %v165 = vld [vmem:[#allocation2 + $0x1b8] sm:$0xff]
    %v166 = vld [vmem:[#allocation2 + $0x1c0] sm:$0xff]
    %v167 = vld [vmem:[#allocation2 + $0x1c8] sm:$0xff]
    %v168 = vld [vmem:[#allocation2 + $0x1d0] sm:$0xff]
    %v169 = vld [vmem:[#allocation2 + $0x1d8] sm:$0xff]
    %v170 = vld [vmem:[#allocation2 + $0x1e0] sm:$0xff]
    %v171 = vld [vmem:[#allocation2 + $0x1e8] sm:$0xff]
    %v172 = vld [vmem:[#allocation2 + $0x1f0] sm:$0xff]
    %v173 = vld [vmem:[#allocation2 + $0x1f8] sm:$0xff]
    %v174 = vld [vmem:[#allocation2 + $0x200] sm:$0xff]
    %v175 = vld [vmem:[#allocation2 + $0x208] sm:$0xff]
    %v176 = vld [vmem:[#allocation2 + $0x210] sm:$0xff]
    %v177 = vld [vmem:[#allocation2 + $0x218] sm:$0xff]
    %v178 = vld [vmem:[#allocation2 + $0x220] sm:$0xff]
    %v179 = vld [vmem:[#allocation2 + $0x228] sm:$0xff]
    %v180 = vld [vmem:[#allocation2 + $0x230] sm:$0xff]
    %v181 = vld [vmem:[#allocation2 + $0x238] sm:$0xff]
    %v182 = vld [vmem:[#allocation2 + $0x240] sm:$0xff]
    %v183 = vld [vmem:[#allocation2 + $0x248] sm:$0xff]
    %v184 = vld [vmem:[#allocation2 + $0x250] sm:$0xff]
    %v185 = vld [vmem:[#allocation2 + $0x258] sm:$0xff]
    %v186 = vld [vmem:[#allocation2 + $0x260] sm:$0xff]
    %v187 = vld [vmem:[#allocation2 + $0x268] sm:$0xff]
    %v188 = vld [vmem:[#allocation2 + $0x270] sm:$0xff]
    %v189 = vld [vmem:[#allocation2 + $0x278] sm:$0xff]
    %v190 = vld [vmem:[#allocation2 + $0x280] sm:$0xff]
    %v191 = vld [vmem:[#allocation2 + $0x288] sm:$0xff]
    %v192 = vld [vmem:[#allocation2 + $0x290] sm:$0xff]
    %v193 = vld [vmem:[#allocation2 + $0x298] sm:$0xff]
    %v194 = vld [vmem:[#allocation2 + $0x2a0] sm:$0xff]
    %v195 = vld [vmem:[#allocation2 + $0x2a8] sm:$0xff]
    %v196 = vld [vmem:[#allocation2 + $0x2b0] sm:$0xff]
    %v197 = vld [vmem:[#allocation2 + $0x2b8] sm:$0xff]
    %v198 = vld [vmem:[#allocation2 + $0x2c0] sm:$0xff]
    %v199 = vld [vmem:[#allocation2 + $0x2c8] sm:$0xff]
    %v200 = vld [vmem:[#allocation2 + $0x2d0] sm:$0xff]
    %v201 = vld [vmem:[#allocation2 + $0x2d8] sm:$0xff]
    %v202 = vld [vmem:[#allocation2 + $0x2e0] sm:$0xff]
    %v203 = vld [vmem:[#allocation2 + $0x2e8] sm:$0xff]
    %v204 = vld [vmem:[#allocation2 + $0x2f0] sm:$0xff]
    %v205 = vld [vmem:[#allocation2 + $0x2f8] sm:$0xff]
    %v206 = vld [vmem:[#allocation2 + $0x300] sm:$0xff]
    %v207 = vld [vmem:[#allocation2 + $0x308] sm:$0xff]
    %v208 = vld [vmem:[#allocation2 + $0x310] sm:$0xff]
    %v209 = vld [vmem:[#allocation2 + $0x318] sm:$0xff]
    %v210 = vld [vmem:[#allocation2 + $0x320] sm:$0xff]
    %v211 = vld [vmem:[#allocation2 + $0x328] sm:$0xff]
    %v212 = vld [vmem:[#allocation2 + $0x330] sm:$0xff]
    %v213 = vld [vmem:[#allocation2 + $0x338] sm:$0xff]
    %v214 = vld [vmem:[#allocation2 + $0x340] sm:$0xff]
    %v215 = vld [vmem:[#allocation2 + $0x348] sm:$0xff]
    %v216 = vld [vmem:[#allocation2 + $0x350] sm:$0xff]
    %v217 = vld [vmem:[#allocation2 + $0x358] sm:$0xff]
    %v218 = vld [vmem:[#allocation2 + $0x360] sm:$0xff]
    %v219 = vld [vmem:[#allocation2 + $0x368] sm:$0xff]
    %v220 = vld [vmem:[#allocation2 + $0x370] sm:$0xff]
    %v221 = vld [vmem:[#allocation2 + $0x378] sm:$0xff]
    %v222 = vld [vmem:[#allocation2 + $0x380] sm:$0xff]
    %v223 = vld [vmem:[#allocation2 + $0x388] sm:$0xff]
    %v224 = vld [vmem:[#allocation2 + $0x390] sm:$0xff]
    %v225 = vld [vmem:[#allocation2 + $0x398] sm:$0xff]
    %v226 = vld [vmem:[#allocation2 + $0x3a0] sm:$0xff]
    %v227 = vld [vmem:[#allocation2 + $0x3a8] sm:$0xff]
    %v228 = vld [vmem:[#allocation2 + $0x3b0] sm:$0xff]
    %v229 = vld [vmem:[#allocation2 + $0x3b8] sm:$0xff]
    %v230 = vld [vmem:[#allocation2 + $0x3c0] sm:$0xff]
    %v231 = vld [vmem:[#allocation2 + $0x3c8] sm:$0xff]
    %v232 = vld [vmem:[#allocation2 + $0x3d0] sm:$0xff]
    %v233 = vld [vmem:[#allocation2 + $0x3d8] sm:$0xff]
    %v234 = vld [vmem:[#allocation2 + $0x3e0] sm:$0xff]
    %v235 = vld [vmem:[#allocation2 + $0x3e8] sm:$0xff]
    %v236 = vld [vmem:[#allocation2 + $0x3f0] sm:$0xff]
    %v237 = vld [vmem:[#allocation2 + $0x3f8] sm:$0xff]
    %v238 = vld [vmem:[#allocation2 + $0x400] sm:$0xff]
    %v239 = vld [vmem:[#allocation2 + $0x408] sm:$0xff]
    %v240 = vld [vmem:[#allocation2 + $0x410] sm:$0xff]
    %v241 = vld [vmem:[#allocation2 + $0x418] sm:$0xff]
    %v242 = vld [vmem:[#allocation2 + $0x420] sm:$0xff]
    %v243 = vld [vmem:[#allocation2 + $0x428] sm:$0xff]
    %v244 = vld [vmem:[#allocation2 + $0x430] sm:$0xff]
    %v245 = vld [vmem:[#allocation2 + $0x438] sm:$0xff]
    %v246 = vld [vmem:[#allocation2 + $0x440] sm:$0xff]
    %v247 = vld [vmem:[#allocation2 + $0x448] sm:$0xff]
    %v248 = vld [vmem:[#allocation2 + $0x450] sm:$0xff]
    %v249 = vld [vmem:[#allocation2 + $0x458] sm:$0xff]
    %v250 = vld [vmem:[#allocation2 + $0x460] sm:$0xff]
    %v251 = vld [vmem:[#allocation2 + $0x468] sm:$0xff]
    %v252 = vld [vmem:[#allocation2 + $0x470] sm:$0xff]
    %v253 = vld [vmem:[#allocation2 + $0x478] sm:$0xff]
    %v254 = vld [vmem:[#allocation2 + $0x480] sm:$0xff]
    %v255 = vld [vmem:[#allocation2 + $0x488] sm:$0xff]
    %v256 = vld [vmem:[#allocation2 + $0x490] sm:$0xff]
    %v257 = vld [vmem:[#allocation2 + $0x498] sm:$0xff]
    %v258 = vld [vmem:[#allocation2 + $0x4a0] sm:$0xff]
    %v259 = vld [vmem:[#allocation2 + $0x4a8] sm:$0xff]
    %v260 = vld [vmem:[#allocation2 + $0x4b0] sm:$0xff]
    %v261 = vld [vmem:[#allocation2 + $0x4b8] sm:$0xff]
    %v262 = vld [vmem:[#allocation2 + $0x4c0] sm:$0xff]
    %v263 = vld [vmem:[#allocation2 + $0x4c8] sm:$0xff]
    %v264 = vld [vmem:[#allocation2 + $0x4d0] sm:$0xff]
    %v265 = vld [vmem:[#allocation2 + $0x4d8] sm:$0xff]
    %v266 = vld [vmem:[#allocation2 + $0x4e0] sm:$0xff]
    %v267 = vld [vmem:[#allocation2 + $0x4e8] sm:$0xff]
    %v268 = vld [vmem:[#allocation2 + $0x4f0] sm:$0xff]
    %v269 = vld [vmem:[#allocation2 + $0x4f8] sm:$0xff]
    %v270 = vld [vmem:[#allocation2 + $0x500] sm:$0xff]
    %v271 = vld [vmem:[#allocation2 + $0x508] sm:$0xff]
    %v272 = vld [vmem:[#allocation2 + $0x510] sm:$0xff]
    %v273 = vld [vmem:[#allocation2 + $0x518] sm:$0xff]
    %v274 = vld [vmem:[#allocation2 + $0x520] sm:$0xff]
    %v275 = vld [vmem:[#allocation2 + $0x528] sm:$0xff]
    %v276 = vld [vmem:[#allocation2 + $0x530] sm:$0xff]
    %v277 = vld [vmem:[#allocation2 + $0x538] sm:$0xff]
    %v278 = vld [vmem:[#allocation2 + $0x540] sm:$0xff]
    %v279 = vld [vmem:[#allocation2 + $0x548] sm:$0xff]
    %v280 = vld [vmem:[#allocation2 + $0x550] sm:$0xff]
    %v281 = vld [vmem:[#allocation2 + $0x558] sm:$0xff]
    %v282 = vld [vmem:[#allocation2 + $0x560] sm:$0xff]
    %v283 = vld [vmem:[#allocation2 + $0x568] sm:$0xff]
    %v284 = vld [vmem:[#allocation2 + $0x570] sm:$0xff]
    %v285 = vld [vmem:[#allocation2 + $0x578] sm:$0xff]
    %v286 = vld [vmem:[#allocation2 + $0x580] sm:$0xff]
    %v287 = vld [vmem:[#allocation2 + $0x588] sm:$0xff]
    %v288 = vld [vmem:[#allocation2 + $0x590] sm:$0xff]
    %v289 = vld [vmem:[#allocation2 + $0x598] sm:$0xff]
    %v290 = vld [vmem:[#allocation2 + $0x5a0] sm:$0xff]
    %v291 = vld [vmem:[#allocation2 + $0x5a8] sm:$0xff]
    %v292 = vld [vmem:[#allocation2 + $0x5b0] sm:$0xff]
    %v293 = vld [vmem:[#allocation2 + $0x5b8] sm:$0xff]
    %v294 = vld [vmem:[#allocation2 + $0x5c0] sm:$0xff]
    %v295 = vld [vmem:[#allocation2 + $0x5c8] sm:$0xff]
    %v296 = vld [vmem:[#allocation2 + $0x5d0] sm:$0xff]
    %v297 = vld [vmem:[#allocation2 + $0x5d8] sm:$0xff]
    %v298 = vld [vmem:[#allocation2 + $0x5e0] sm:$0xff]
    %v299 = vld [vmem:[#allocation2 + $0x5e8] sm:$0xff]
    %v300 = vld [vmem:[#allocation2 + $0x5f0] sm:$0xff]
    %v301 = vld [vmem:[#allocation2 + $0x5f8] sm:$0xff]
    %v302 = vld [vmem:[#allocation2 + $0x600] sm:$0xff]
    %v303 = vld [vmem:[#allocation2 + $0x608] sm:$0xff]
    %v304 = vld [vmem:[#allocation2 + $0x610] sm:$0xff]
    %v305 = vld [vmem:[#allocation2 + $0x618] sm:$0xff]
    %v306 = vld [vmem:[#allocation2 + $0x620] sm:$0xff]
    %v307 = vld [vmem:[#allocation2 + $0x628] sm:$0xff]
    %v308 = vld [vmem:[#allocation2 + $0x630] sm:$0xff]
    %v309 = vld [vmem:[#allocation2 + $0x638] sm:$0xff]
    %v310 = vld [vmem:[#allocation2 + $0x640] sm:$0xff]
    %v311 = vld [vmem:[#allocation2 + $0x648] sm:$0xff]
    %v312 = vld [vmem:[#allocation2 + $0x650] sm:$0xff]
    %v313 = vld [vmem:[#allocation2 + $0x658] sm:$0xff]
    %v314 = vld [vmem:[#allocation2 + $0x660] sm:$0xff]
    %v315 = vld [vmem:[#allocation2 + $0x668] sm:$0xff]
    %v316 = vld [vmem:[#allocation2 + $0x670] sm:$0xff]
    %v317 = vld [vmem:[#allocation2 + $0x678] sm:$0xff]
    %v318 = vld [vmem:[#allocation2 + $0x680] sm:$0xff]
    %v319 = vld [vmem:[#allocation2 + $0x688] sm:$0xff]
    %v320 = vld [vmem:[#allocation2 + $0x690] sm:$0xff]
    %v321 = vld [vmem:[#allocation2 + $0x698] sm:$0xff]
    %v322 = vld [vmem:[#allocation2 + $0x6a0] sm:$0xff]
    %v323 = vld [vmem:[#allocation2 + $0x6a8] sm:$0xff]
    %v324 = vld [vmem:[#allocation2 + $0x6b0] sm:$0xff]
    %v325 = vld [vmem:[#allocation2 + $0x6b8] sm:$0xff]
    %v326 = vld [vmem:[#allocation2 + $0x6c0] sm:$0xff]
    %v327 = vld [vmem:[#allocation2 + $0x6c8] sm:$0xff]
    %v328 = vld [vmem:[#allocation2 + $0x6d0] sm:$0xff]
    %v329 = vld [vmem:[#allocation2 + $0x6d8] sm:$0xff]
    %v330 = vld [vmem:[#allocation2 + $0x6e0] sm:$0xff]
    %v331 = vld [vmem:[#allocation2 + $0x6e8] sm:$0xff]
    %v332 = vld [vmem:[#allocation2 + $0x6f0] sm:$0xff]
    %v333 = vld [vmem:[#allocation2 + $0x6f8] sm:$0xff]
    %v334 = vld [vmem:[#allocation2 + $0x700] sm:$0xff]
    %v335 = vld [vmem:[#allocation2 + $0x708] sm:$0xff]
    %v336 = vld [vmem:[#allocation2 + $0x710] sm:$0xff]
    %v337 = vld [vmem:[#allocation2 + $0x718] sm:$0xff]
    %v338 = vld [vmem:[#allocation2 + $0x720] sm:$0xff]
    %v339 = vld [vmem:[#allocation2 + $0x728] sm:$0xff]
    %v340 = vld [vmem:[#allocation2 + $0x730] sm:$0xff]
    %v341 = vld [vmem:[#allocation2 + $0x738] sm:$0xff]
    %v342 = vld [vmem:[#allocation2 + $0x740] sm:$0xff]
    %v343 = vld [vmem:[#allocation2 + $0x748] sm:$0xff]
    %v344 = vld [vmem:[#allocation2 + $0x750] sm:$0xff]
    %v345 = vld [vmem:[#allocation2 + $0x758] sm:$0xff]
    %v346 = vld [vmem:[#allocation2 + $0x760] sm:$0xff]
    %v347 = vld [vmem:[#allocation2 + $0x768] sm:$0xff]
    %v348 = vld [vmem:[#allocation2 + $0x770] sm:$0xff]
    %v349 = vld [vmem:[#allocation2 + $0x778] sm:$0xff]
    %v350 = vld [vmem:[#allocation2 + $0x780] sm:$0xff]
    %v351 = vld [vmem:[#allocation2 + $0x788] sm:$0xff]
    %v352 = vld [vmem:[#allocation2 + $0x790] sm:$0xff]
    %v353 = vld [vmem:[#allocation2 + $0x798] sm:$0xff]
    %v354 = vld [vmem:[#allocation2 + $0x7a0] sm:$0xff]
    %v355 = vld [vmem:[#allocation2 + $0x7a8] sm:$0xff]
    %v356 = vld [vmem:[#allocation2 + $0x7b0] sm:$0xff]
    %v357 = vld [vmem:[#allocation2 + $0x7b8] sm:$0xff]
    %v358 = vld [vmem:[#allocation2 + $0x7c0] sm:$0xff]
    %v359 = vld [vmem:[#allocation2 + $0x7c8] sm:$0xff]
    %v360 = vld [vmem:[#allocation2 + $0x7d0] sm:$0xff]
    %v361 = vld [vmem:[#allocation2 + $0x7d8] sm:$0xff]
    %v362 = vld [vmem:[#allocation2 + $0x7e0] sm:$0xff]
    %v363 = vld [vmem:[#allocation2 + $0x7e8] sm:$0xff]
    %v364 = vld [vmem:[#allocation2 + $0x7f0] sm:$0xff]
    %v365 = vld [vmem:[#allocation2 + $0x7f8] sm:$0xff]
    %v366 = vld [vmem:[#allocation2 + $0x800] sm:$0xff]
    %v367 = vld [vmem:[#allocation2 + $0x808] sm:$0xff]
    %v368 = vld [vmem:[#allocation2 + $0x810] sm:$0xff]
    %v369 = vld [vmem:[#allocation2 + $0x818] sm:$0xff]
    %v370 = vld [vmem:[#allocation2 + $0x820] sm:$0xff]
    %v371 = vld [vmem:[#allocation2 + $0x828] sm:$0xff]
    %v372 = vld [vmem:[#allocation2 + $0x830] sm:$0xff]
    %v373 = vld [vmem:[#allocation2 + $0x838] sm:$0xff]
    %v374 = vld [vmem:[#allocation2 + $0x840] sm:$0xff]
    %v375 = vld [vmem:[#allocation2 + $0x848] sm:$0xff]
    %v376 = vld [vmem:[#allocation2 + $0x850] sm:$0xff]
    %v377 = vld [vmem:[#allocation2 + $0x858] sm:$0xff]
    %v378 = vld [vmem:[#allocation2 + $0x860] sm:$0xff]
    %v379 = vld [vmem:[#allocation2 + $0x868] sm:$0xff]
    %v380 = vld [vmem:[#allocation2 + $0x870] sm:$0xff]
    %v381 = vld [vmem:[#allocation2 + $0x878] sm:$0xff]
    %v382 = vld [vmem:[#allocation2 + $0x880] sm:$0xff]
    %v383 = vld [vmem:[#allocation2 + $0x888] sm:$0xff]
    %v384 = vld [vmem:[#allocation2 + $0x890] sm:$0xff]
    %v385 = vld [vmem:[#allocation2 + $0x898] sm:$0xff]
    %v386 = vld [vmem:[#allocation2 + $0x8a0] sm:$0xff]
    %v387 = vld [vmem:[#allocation2 + $0x8a8] sm:$0xff]
    %v388 = vld [vmem:[#allocation2 + $0x8b0] sm:$0xff]
    %v389 = vld [vmem:[#allocation2 + $0x8b8] sm:$0xff]
    %v390 = vld [vmem:[#allocation2 + $0x8c0] sm:$0xff]
    %v391 = vld [vmem:[#allocation2 + $0x8c8] sm:$0xff]
    %v392 = vld [vmem:[#allocation2 + $0x8d0] sm:$0xff]
    %v393 = vld [vmem:[#allocation2 + $0x8d8] sm:$0xff]
    %v394 = vld [vmem:[#allocation2 + $0x8e0] sm:$0xff]
    %v395 = vld [vmem:[#allocation2 + $0x8e8] sm:$0xff]
    %v396 = vld [vmem:[#allocation2 + $0x8f0] sm:$0xff]
    %v397 = vld [vmem:[#allocation2 + $0x8f8] sm:$0xff]
    %v398 = vld [vmem:[#allocation2 + $0x900] sm:$0xff]
    %v399 = vld [vmem:[#allocation2 + $0x908] sm:$0xff]
    %v400 = vld [vmem:[#allocation2 + $0x910] sm:$0xff]
    %v401 = vld [vmem:[#allocation2 + $0x918] sm:$0xff]
    %v402 = vld [vmem:[#allocation2 + $0x920] sm:$0xff]
    %v403 = vld [vmem:[#allocation2 + $0x928] sm:$0xff]
    %v404 = vld [vmem:[#allocation2 + $0x930] sm:$0xff]
    %v405 = vld [vmem:[#allocation2 + $0x938] sm:$0xff]
    %v406 = vld [vmem:[#allocation2 + $0x940] sm:$0xff]
    %v407 = vld [vmem:[#allocation2 + $0x948] sm:$0xff]
    %v408 = vld [vmem:[#allocation2 + $0x950] sm:$0xff]
    %v409 = vld [vmem:[#allocation2 + $0x958] sm:$0xff]
    %v410 = vld [vmem:[#allocation2 + $0x960] sm:$0xff]
    %v411 = vld [vmem:[#allocation2 + $0x968] sm:$0xff]
    %v412 = vld [vmem:[#allocation2 + $0x970] sm:$0xff]
    %v413 = vld [vmem:[#allocation2 + $0x978] sm:$0xff]
    %v414 = vld [vmem:[#allocation2 + $0x980] sm:$0xff]
    %v415 = vld [vmem:[#allocation2 + $0x988] sm:$0xff]
    %v416 = vld [vmem:[#allocation2 + $0x990] sm:$0xff]
    %v417 = vld [vmem:[#allocation2 + $0x998] sm:$0xff]
    %v418 = vld [vmem:[#allocation2 + $0x9a0] sm:$0xff]
    %v419 = vld [vmem:[#allocation2 + $0x9a8] sm:$0xff]
    %v420 = vld [vmem:[#allocation2 + $0x9b0] sm:$0xff]
    %v421 = vld [vmem:[#allocation2 + $0x9b8] sm:$0xff]
    %v422 = vld [vmem:[#allocation2 + $0x9c0] sm:$0xff]
    %v423 = vld [vmem:[#allocation2 + $0x9c8] sm:$0xff]
    %v424 = vld [vmem:[#allocation2 + $0x9d0] sm:$0xff]
    %v425 = vld [vmem:[#allocation2 + $0x9d8] sm:$0xff]
    %v426 = vld [vmem:[#allocation2 + $0x9e0] sm:$0xff]
    %v427 = vld [vmem:[#allocation2 + $0x9e8] sm:$0xff]
    %v428 = vld [vmem:[#allocation2 + $0x9f0] sm:$0xff]
    %v429 = vld [vmem:[#allocation2 + $0x9f8] sm:$0xff]
    %v430 = vld [vmem:[#allocation2 + $0xa00] sm:$0xff]
    %v431 = vld [vmem:[#allocation2 + $0xa08] sm:$0xff]
    %v432 = vld [vmem:[#allocation2 + $0xa10] sm:$0xff]
    %v433 = vld [vmem:[#allocation2 + $0xa18] sm:$0xff]
    %v434 = vld [vmem:[#allocation2 + $0xa20] sm:$0xff]
    %v435 = vld [vmem:[#allocation2 + $0xa28] sm:$0xff]
    %v436 = vld [vmem:[#allocation2 + $0xa30] sm:$0xff]
    %v437 = vld [vmem:[#allocation2 + $0xa38] sm:$0xff]
    %v438 = vld [vmem:[#allocation2 + $0xa40] sm:$0xff]
    %v439 = vld [vmem:[#allocation2 + $0xa48] sm:$0xff]
    %v440 = vld [vmem:[#allocation2 + $0xa50] sm:$0xff]
    %v441 = vld [vmem:[#allocation2 + $0xa58] sm:$0xff]
    %v442 = vld [vmem:[#allocation2 + $0xa60] sm:$0xff]
    %v443 = vld [vmem:[#allocation2 + $0xa68] sm:$0xff]
    %v444 = vld [vmem:[#allocation2 + $0xa70] sm:$0xff]
    %v445 = vld [vmem:[#allocation2 + $0xa78] sm:$0xff]
    %v446 = vld [vmem:[#allocation2 + $0xa80] sm:$0xff]
    %v447 = vld [vmem:[#allocation2 + $0xa88] sm:$0xff]
    %v448 = vld [vmem:[#allocation2 + $0xa90] sm:$0xff]
    %v449 = vld [vmem:[#allocation2 + $0xa98] sm:$0xff]
    %v450 = vld [vmem:[#allocation2 + $0xaa0] sm:$0xff]
    %v451 = vld [vmem:[#allocation2 + $0xaa8] sm:$0xff]
    %v452 = vld [vmem:[#allocation2 + $0xab0] sm:$0xff]
    %v453 = vld [vmem:[#allocation2 + $0xab8] sm:$0xff]
    %v454 = vld [vmem:[#allocation2 + $0xac0] sm:$0xff]
    %v455 = vld [vmem:[#allocation2 + $0xac8] sm:$0xff]
    %v456 = vld [vmem:[#allocation2 + $0xad0] sm:$0xff]
    %v457 = vld [vmem:[#allocation2 + $0xad8] sm:$0xff]
    %v458 = vld [vmem:[#allocation2 + $0xae0] sm:$0xff]
    %v459 = vld [vmem:[#allocation2 + $0xae8] sm:$0xff]
    %v460 = vld [vmem:[#allocation2 + $0xaf0] sm:$0xff]
    %v461 = vld [vmem:[#allocation2 + $0xaf8] sm:$0xff]
    %v462 = vld [vmem:[#allocation2 + $0xb00] sm:$0xff]
    %v463 = vld [vmem:[#allocation2 + $0xb08] sm:$0xff]
    %v464 = vld [vmem:[#allocation2 + $0xb10] sm:$0xff]
    %v465 = vld [vmem:[#allocation2 + $0xb18] sm:$0xff]
    %v466 = vld [vmem:[#allocation2 + $0xb20] sm:$0xff]
    %v467 = vld [vmem:[#allocation2 + $0xb28] sm:$0xff]
    %v468 = vld [vmem:[#allocation2 + $0xb30] sm:$0xff]
    %v469 = vld [vmem:[#allocation2 + $0xb38] sm:$0xff]
    %v470 = vld [vmem:[#allocation2 + $0xb40] sm:$0xff]
    %v471 = vld [vmem:[#allocation2 + $0xb48] sm:$0xff]
    %v472 = vld [vmem:[#allocation2 + $0xb50] sm:$0xff]
    %v473 = vld [vmem:[#allocation2 + $0xb58] sm:$0xff]
    %v474 = vld [vmem:[#allocation2 + $0xb60] sm:$0xff]
    %v475 = vld [vmem:[#allocation2 + $0xb68] sm:$0xff]
    %v476 = vld [vmem:[#allocation2 + $0xb70] sm:$0xff]
    %v477 = vld [vmem:[#allocation2 + $0xb78] sm:$0xff]
    %v478 = vld [vmem:[#allocation2 + $0xb80] sm:$0xff]
    %v479 = vld [vmem:[#allocation2 + $0xb88] sm:$0xff]
    %v480 = vld [vmem:[#allocation2 + $0xb90] sm:$0xff]
    %v481 = vld [vmem:[#allocation2 + $0xb98] sm:$0xff]
    %v482 = vld [vmem:[#allocation2 + $0xba0] sm:$0xff]
    %v483 = vld [vmem:[#allocation2 + $0xba8] sm:$0xff]
    %v484 = vld [vmem:[#allocation2 + $0xbb0] sm:$0xff]
    %v485 = vld [vmem:[#allocation2 + $0xbb8] sm:$0xff]
    %v486 = vld [vmem:[#allocation2 + $0xbc0] sm:$0xff]
    %v487 = vld [vmem:[#allocation2 + $0xbc8] sm:$0xff]
    %v488 = vld [vmem:[#allocation2 + $0xbd0] sm:$0xff]
    %v489 = vld [vmem:[#allocation2 + $0xbd8] sm:$0xff]
    %v490 = vld [vmem:[#allocation2 + $0xbe0] sm:$0xff]
    %v491 = vld [vmem:[#allocation2 + $0xbe8] sm:$0xff]
    %v492 = vld [vmem:[#allocation2 + $0xbf0] sm:$0xff]
    %v493 = vld [vmem:[#allocation2 + $0xbf8] sm:$0xff]
    %v494 = vld [vmem:[#allocation4] sm:$0x7]
    %v496 = vlaneseq
    %v497 = vshrl.u32 %v496, 7
    %v498 = vsub.s32 0, %v497
    %v499 = vrot.slane %v494, %v498
    %v500 = vlaneseq
    %v501 = vshrl.u32 %v500, 7
    %v502 = vsub.s32 1, %v501
    %v503 = vrot.slane %v494, %v502
    %v504 = vlaneseq
    %v505 = vshrl.u32 %v504, 7
    %v506 = vsub.s32 2, %v505
    %v507 = vrot.slane %v494, %v506
    %511 = vmatprep.subr.mxu0 %v156
    %512 = vmatpush1.msra.mxu0 %v155
    %513 = vmatprep.subr.mxu0 %v153
    %514 = vmatpush1.msra.mxu0 %v152
    %515 = vmatprep.subr.mxu0 %v150
    %516 = vmatpush1.msra.mxu0 %v149
    %517 = vmatprep.subr.mxu0 %v147
    %518 = vmatpush1.msra.mxu0 %v146
    %519 = vmatprep.subr.mxu0 %v144
    %520 = vmatpush1.msra.mxu0 %v143
    %521 = vmatprep.subr.mxu0 %v141
    %522 = vmatpush1.msra.mxu0 %v140
    %523 = vmatprep.subr.mxu0 %v138
    %524 = vmatpush1.msra.mxu0 %v137
    %525 = vmatprep.subr.mxu0 %v135
    %526 = vmatpush1.msra.mxu0 %v134
    %527 = vmatprep.subr.mxu0 %v132
    %528 = vmatpush1.msra.mxu0 %v131
    %529 = vmatprep.subr.mxu0 %v129
    %530 = vmatpush1.msra.mxu0 %v128
    %531 = vmatprep.subr.mxu0 %v126
    %532 = vmatpush1.msra.mxu0 %v125
    %533 = vmatprep.subr.mxu0 %v123
    %534 = vmatpush1.msra.mxu0 %v122
    %535 = vmatprep.subr.mxu0 %v120
    %536 = vmatpush1.msra.mxu0 %v119
    %537 = vmatprep.subr.mxu0 %v117
    %538 = vmatpush1.msra.mxu0 %v116
    %539 = vmatprep.subr.mxu0 %v114
    %540 = vmatpush1.msra.mxu0 %v113
    %541 = vmatprep.subr.mxu0 %v111
    %542 = vmatpush1.msra.mxu0 %v110
    %543 = vmatprep.subr.mxu0 %v204
    %544 = vmatpush2.msra.mxu0 %v203
    %545 = vmatprep.subr.mxu0 %v201
    %546 = vmatpush2.msra.mxu0 %v200
    %547 = vmatprep.subr.mxu0 %v198
    %548 = vmatpush2.msra.mxu0 %v197
    %549 = vmatprep.subr.mxu0 %v195
    %550 = vmatpush2.msra.mxu0 %v194
    %551 = vmatprep.subr.mxu0 %v192
    %552 = vmatpush2.msra.mxu0 %v191
    %553 = vmatprep.subr.mxu0 %v189
    %554 = vmatpush2.msra.mxu0 %v188
    %555 = vmatprep.subr.mxu0 %v186
    %556 = vmatpush2.msra.mxu0 %v185
    %557 = vmatprep.subr.mxu0 %v183
    %558 = vmatpush2.msra.mxu0 %v182
    %559 = vmatprep.subr.mxu0 %v180
    %560 = vmatpush2.msra.mxu0 %v179
    %561 = vmatprep.subr.mxu0 %v177
    %562 = vmatpush2.msra.mxu0 %v176
    %563 = vmatprep.subr.mxu0 %v174
    %564 = vmatpush2.msra.mxu0 %v173
    %565 = vmatprep.subr.mxu0 %v171
    %566 = vmatpush2.msra.mxu0 %v170
    %567 = vmatprep.subr.mxu0 %v168
    %568 = vmatpush2.msra.mxu0 %v167
    %569 = vmatprep.subr.mxu0 %v165
    %570 = vmatpush2.msra.mxu0 %v164
    %571 = vmatprep.subr.mxu0 %v162
    %572 = vmatpush2.msra.mxu0 %v161
    %573 = vmatprep.subr.mxu0 %v159
    %574 = vmatpush2.msra.mxu0 %v158
    %575 = vmatprep.mubr.f32.mxu0 %v103
    %576 = vmatmul.mubr.f32.gmra.mxu0 %v102
    %v577 = vpop.f32.mrf.mxu0
    %v578 = vadd.f32 %v499, %v577
    %v579 = vpop.f32.mrf.mxu0
    %v580 = vadd.f32 %v503, %v579
    %581 = vdwg.mxu0
    %582 = vmatprep.subr.mxu0 %v252
    %583 = vmatpush1.msra.mxu0 %v251
    %584 = vmatprep.subr.mxu0 %v249
    %585 = vmatpush1.msra.mxu0 %v248
    %586 = vmatprep.subr.mxu0 %v246
    %587 = vmatpush1.msra.mxu0 %v245
    %588 = vmatprep.subr.mxu0 %v243
    %589 = vmatpush1.msra.mxu0 %v242
    %590 = vmatprep.subr.mxu0 %v240
    %591 = vmatpush1.msra.mxu0 %v239
    %592 = vmatprep.subr.mxu0 %v237
    %593 = vmatpush1.msra.mxu0 %v236
    %594 = vmatprep.subr.mxu0 %v234
    %595 = vmatpush1.msra.mxu0 %v233
    %596 = vmatprep.subr.mxu0 %v231
    %597 = vmatpush1.msra.mxu0 %v230
    %598 = vmatprep.subr.mxu0 %v228
    %599 = vmatpush1.msra.mxu0 %v227
    %600 = vmatprep.subr.mxu0 %v225
    %601 = vmatpush1.msra.mxu0 %v224
    %602 = vmatprep.subr.mxu0 %v222
    %603 = vmatpush1.msra.mxu0 %v221
    %604 = vmatprep.subr.mxu0 %v219
    %605 = vmatpush1.msra.mxu0 %v218
    %606 = vmatprep.subr.mxu0 %v216
    %607 = vmatpush1.msra.mxu0 %v215
    %608 = vmatprep.subr.mxu0 %v213
    %609 = vmatpush1.msra.mxu0 %v212
    %610 = vmatprep.subr.mxu0 %v210
    %611 = vmatpush1.msra.mxu0 %v209
    %612 = vmatprep.subr.mxu0 %v207
    %613 = vmatpush1.msra.mxu0 %v206
    %614 = vmatprep.subr.mxu0 %v300
    %615 = vmatpush2.msra.mxu0 %v299
    %616 = vmatprep.subr.mxu0 %v297
    %617 = vmatpush2.msra.mxu0 %v296
    %618 = vmatprep.subr.mxu0 %v294
    %619 = vmatpush2.msra.mxu0 %v293
    %620 = vmatprep.subr.mxu0 %v291
    %621 = vmatpush2.msra.mxu0 %v290
    %622 = vmatprep.subr.mxu0 %v288
    %623 = vmatpush2.msra.mxu0 %v287
    %624 = vmatprep.subr.mxu0 %v285
    %625 = vmatpush2.msra.mxu0 %v284
    %626 = vmatprep.subr.mxu0 %v282
    %627 = vmatpush2.msra.mxu0 %v281
    %628 = vmatprep.subr.mxu0 %v279
    %629 = vmatpush2.msra.mxu0 %v278
    %630 = vmatprep.subr.mxu0 %v276
    %631 = vmatpush2.msra.mxu0 %v275
    %632 = vmatprep.subr.mxu0 %v273
    %633 = vmatpush2.msra.mxu0 %v272
    %634 = vmatprep.subr.mxu0 %v270
    %635 = vmatpush2.msra.mxu0 %v269
    %636 = vmatprep.subr.mxu0 %v267
    %637 = vmatpush2.msra.mxu0 %v266
    %638 = vmatprep.subr.mxu0 %v264
    %639 = vmatpush2.msra.mxu0 %v263
    %640 = vmatprep.subr.mxu0 %v261
    %641 = vmatpush2.msra.mxu0 %v260
    %642 = vmatprep.subr.mxu0 %v258
    %643 = vmatpush2.msra.mxu0 %v257
    %644 = vmatprep.subr.mxu0 %v255
    %645 = vmatpush2.msra.mxu0 %v254
    %646 = vmatprep.mubr.f32.mxu0 %v105
    %647 = vmatmul.mubr.f32.gmra.mxu0 %v104
    %v648 = vpop.f32.mrf.mxu0
    %v649 = vadd.f32 %v578, %v648
    %v650 = vpop.f32.mrf.mxu0
    %v651 = vadd.f32 %v580, %v650
    %652 = vdwg.mxu0
    %653 = vmatprep.subr.mxu0 %v348
    %654 = vmatpush1.msra.mxu0 %v347
    %655 = vmatprep.subr.mxu0 %v345
    %656 = vmatpush1.msra.mxu0 %v344
    %657 = vmatprep.subr.mxu0 %v342
    %658 = vmatpush1.msra.mxu0 %v341
    %659 = vmatprep.subr.mxu0 %v339
    %660 = vmatpush1.msra.mxu0 %v338
    %661 = vmatprep.subr.mxu0 %v336
    %662 = vmatpush1.msra.mxu0 %v335
    %663 = vmatprep.subr.mxu0 %v333
    %664 = vmatpush1.msra.mxu0 %v332
    %665 = vmatprep.subr.mxu0 %v330
    %666 = vmatpush1.msra.mxu0 %v329
    %667 = vmatprep.subr.mxu0 %v327
    %668 = vmatpush1.msra.mxu0 %v326
    %669 = vmatprep.subr.mxu0 %v324
    %670 = vmatpush1.msra.mxu0 %v323
    %671 = vmatprep.subr.mxu0 %v321
    %672 = vmatpush1.msra.mxu0 %v320
    %673 = vmatprep.subr.mxu0 %v318
    %674 = vmatpush1.msra.mxu0 %v317
    %675 = vmatprep.subr.mxu0 %v315
    %676 = vmatpush1.msra.mxu0 %v314
    %677 = vmatprep.subr.mxu0 %v312
    %678 = vmatpush1.msra.mxu0 %v311
    %679 = vmatprep.subr.mxu0 %v309
    %680 = vmatpush1.msra.mxu0 %v308
    %681 = vmatprep.subr.mxu0 %v306
    %682 = vmatpush1.msra.mxu0 %v305
    %683 = vmatprep.subr.mxu0 %v303
    %684 = vmatpush1.msra.mxu0 %v302
    %685 = vmatprep.subr.mxu0 %v396
    %686 = vmatpush2.msra.mxu0 %v395
    %687 = vmatprep.subr.mxu0 %v393
    %688 = vmatpush2.msra.mxu0 %v392
    %689 = vmatprep.subr.mxu0 %v390
    %690 = vmatpush2.msra.mxu0 %v389
    %691 = vmatprep.subr.mxu0 %v387
    %692 = vmatpush2.msra.mxu0 %v386
    %693 = vmatprep.subr.mxu0 %v384
    %694 = vmatpush2.msra.mxu0 %v383
    %695 = vmatprep.subr.mxu0 %v381
    %696 = vmatpush2.msra.mxu0 %v380
    %697 = vmatprep.subr.mxu0 %v378
    %698 = vmatpush2.msra.mxu0 %v377
    %699 = vmatprep.subr.mxu0 %v375
    %700 = vmatpush2.msra.mxu0 %v374
    %701 = vmatprep.subr.mxu0 %v372
    %702 = vmatpush2.msra.mxu0 %v371
    %703 = vmatprep.subr.mxu0 %v369
    %704 = vmatpush2.msra.mxu0 %v368
    %705 = vmatprep.subr.mxu0 %v366
    %706 = vmatpush2.msra.mxu0 %v365
    %707 = vmatprep.subr.mxu0 %v363
    %708 = vmatpush2.msra.mxu0 %v362
    %709 = vmatprep.subr.mxu0 %v360
    %710 = vmatpush2.msra.mxu0 %v359
    %711 = vmatprep.subr.mxu0 %v357
    %712 = vmatpush2.msra.mxu0 %v356
    %713 = vmatprep.subr.mxu0 %v354
    %714 = vmatpush2.msra.mxu0 %v353
    %715 = vmatprep.subr.mxu0 %v351
    %716 = vmatpush2.msra.mxu0 %v350
    %717 = vmatprep.mubr.f32.mxu0 %v107
    %718 = vmatmul.mubr.f32.gmra.mxu0 %v106
    %v719 = vpop.f32.mrf.mxu0
    %v720 = vadd.f32 %v649, %v719
    %v721 = vpop.f32.mrf.mxu0
    %v722 = vadd.f32 %v651, %v721
    %723 = vdwg.mxu0
    %724 = vmatprep.subr.mxu0 %v444
    %725 = vmatpush1.msra.mxu0 %v443
    %726 = vmatprep.subr.mxu0 %v441
    %727 = vmatpush1.msra.mxu0 %v440
    %728 = vmatprep.subr.mxu0 %v438
    %729 = vmatpush1.msra.mxu0 %v437
    %730 = vmatprep.subr.mxu0 %v435
    %731 = vmatpush1.msra.mxu0 %v434
    %732 = vmatprep.subr.mxu0 %v432
    %733 = vmatpush1.msra.mxu0 %v431
    %734 = vmatprep.subr.mxu0 %v429
    %735 = vmatpush1.msra.mxu0 %v428
    %736 = vmatprep.subr.mxu0 %v426
    %737 = vmatpush1.msra.mxu0 %v425
    %738 = vmatprep.subr.mxu0 %v423
    %739 = vmatpush1.msra.mxu0 %v422
    %740 = vmatprep.subr.mxu0 %v420
    %741 = vmatpush1.msra.mxu0 %v419
    %742 = vmatprep.subr.mxu0 %v417
    %743 = vmatpush1.msra.mxu0 %v416
    %744 = vmatprep.subr.mxu0 %v414
    %745 = vmatpush1.msra.mxu0 %v413
    %746 = vmatprep.subr.mxu0 %v411
    %747 = vmatpush1.msra.mxu0 %v410
    %748 = vmatprep.subr.mxu0 %v408
    %749 = vmatpush1.msra.mxu0 %v407
    %750 = vmatprep.subr.mxu0 %v405
    %751 = vmatpush1.msra.mxu0 %v404
    %752 = vmatprep.subr.mxu0 %v402
    %753 = vmatpush1.msra.mxu0 %v401
    %754 = vmatprep.subr.mxu0 %v399
    %755 = vmatpush1.msra.mxu0 %v398
    %756 = vmatprep.subr.mxu0 %v492
    %757 = vmatpush2.msra.mxu0 %v491
    %758 = vmatprep.subr.mxu0 %v489
    %759 = vmatpush2.msra.mxu0 %v488
    %760 = vmatprep.subr.mxu0 %v486
    %761 = vmatpush2.msra.mxu0 %v485
    %762 = vmatprep.subr.mxu0 %v483
    %763 = vmatpush2.msra.mxu0 %v482
    %764 = vmatprep.subr.mxu0 %v480
    %765 = vmatpush2.msra.mxu0 %v479
    %766 = vmatprep.subr.mxu0 %v477
    %767 = vmatpush2.msra.mxu0 %v476
    %768 = vmatprep.subr.mxu0 %v474
    %769 = vmatpush2.msra.mxu0 %v473
    %770 = vmatprep.subr.mxu0 %v471
    %771 = vmatpush2.msra.mxu0 %v470
    %772 = vmatprep.subr.mxu0 %v468
    %773 = vmatpush2.msra.mxu0 %v467
    %774 = vmatprep.subr.mxu0 %v465
    %775 = vmatpush2.msra.mxu0 %v464
    %776 = vmatprep.subr.mxu0 %v462
    %777 = vmatpush2.msra.mxu0 %v461
    %778 = vmatprep.subr.mxu0 %v459
    %779 = vmatpush2.msra.mxu0 %v458
    %780 = vmatprep.subr.mxu0 %v456
    %781 = vmatpush2.msra.mxu0 %v455
    %782 = vmatprep.subr.mxu0 %v453
    %783 = vmatpush2.msra.mxu0 %v452
    %784 = vmatprep.subr.mxu0 %v450
    %785 = vmatpush2.msra.mxu0 %v449
    %786 = vmatprep.subr.mxu0 %v447
    %787 = vmatpush2.msra.mxu0 %v446
    %788 = vmatprep.mubr.f32.mxu0 %v109
    %789 = vmatmul.mubr.f32.gmra.mxu0 %v108
    %v790 = vpop.f32.mrf.mxu0
    %v791 = vadd.f32 %v720, %v790
    %v792 = vpop.f32.mrf.mxu0
    %v793 = vadd.f32 %v722, %v792
    %794 = vdwg.mxu0
    %795 = vmatprep.subr.mxu0 0.0
    %796 = vmatpush1.msra.mxu0 %v157
    %797 = vmatprep.subr.mxu0 0.0
    %798 = vmatpush1.msra.mxu0 %v154
    %799 = vmatprep.subr.mxu0 0.0
    %800 = vmatpush1.msra.mxu0 %v151
    %801 = vmatprep.subr.mxu0 0.0
    %802 = vmatpush1.msra.mxu0 %v148
    %803 = vmatprep.subr.mxu0 0.0
    %804 = vmatpush1.msra.mxu0 %v145
    %805 = vmatprep.subr.mxu0 0.0
    %806 = vmatpush1.msra.mxu0 %v142
    %807 = vmatprep.subr.mxu0 0.0
    %808 = vmatpush1.msra.mxu0 %v139
    %809 = vmatprep.subr.mxu0 0.0
    %810 = vmatpush1.msra.mxu0 %v136
    %811 = vmatprep.subr.mxu0 0.0
    %812 = vmatpush1.msra.mxu0 %v133
    %813 = vmatprep.subr.mxu0 0.0
    %814 = vmatpush1.msra.mxu0 %v130
    %815 = vmatprep.subr.mxu0 0.0
    %816 = vmatpush1.msra.mxu0 %v127
    %817 = vmatprep.subr.mxu0 0.0
    %818 = vmatpush1.msra.mxu0 %v124
    %819 = vmatprep.subr.mxu0 0.0
    %820 = vmatpush1.msra.mxu0 %v121
    %821 = vmatprep.subr.mxu0 0.0
    %822 = vmatpush1.msra.mxu0 %v118
    %823 = vmatprep.subr.mxu0 0.0
    %824 = vmatpush1.msra.mxu0 %v115
    %825 = vmatprep.subr.mxu0 0.0
    %826 = vmatpush1.msra.mxu0 %v112
    %827 = vmatprep.subr.mxu0 0.0
    %828 = vmatpush2.msra.mxu0 %v205
    %829 = vmatprep.subr.mxu0 0.0
    %830 = vmatpush2.msra.mxu0 %v202
    %831 = vmatprep.subr.mxu0 0.0
    %832 = vmatpush2.msra.mxu0 %v199
    %833 = vmatprep.subr.mxu0 0.0
    %834 = vmatpush2.msra.mxu0 %v196
    %835 = vmatprep.subr.mxu0 0.0
    %836 = vmatpush2.msra.mxu0 %v193
    %837 = vmatprep.subr.mxu0 0.0
    %838 = vmatpush2.msra.mxu0 %v190
    %839 = vmatprep.subr.mxu0 0.0
    %840 = vmatpush2.msra.mxu0 %v187
    %841 = vmatprep.subr.mxu0 0.0
    %842 = vmatpush2.msra.mxu0 %v184
    %843 = vmatprep.subr.mxu0 0.0
    %844 = vmatpush2.msra.mxu0 %v181
    %845 = vmatprep.subr.mxu0 0.0
    %846 = vmatpush2.msra.mxu0 %v178
    %847 = vmatprep.subr.mxu0 0.0
    %848 = vmatpush2.msra.mxu0 %v175
    %849 = vmatprep.subr.mxu0 0.0
    %850 = vmatpush2.msra.mxu0 %v172
    %851 = vmatprep.subr.mxu0 0.0
    %852 = vmatpush2.msra.mxu0 %v169
    %853 = vmatprep.subr.mxu0 0.0
    %854 = vmatpush2.msra.mxu0 %v166
    %855 = vmatprep.subr.mxu0 0.0
    %856 = vmatpush2.msra.mxu0 %v163
    %857 = vmatprep.subr.mxu0 0.0
    %858 = vmatpush2.msra.mxu0 %v160
    %859 = vmatprep.mubr.f32.mxu0 %v103
    %860 = vmatmul.mubr.f32.gmra.mxu0 %v102
    %v861 = vpop.f32.mrf.mxu0
    %v862 = vadd.f32 %v507, %v861
    %v863 = vpop.f32.mrf.mxu0
    %864 = vdwg.mxu0
    %865 = vmatprep.subr.mxu0 0.0
    %866 = vmatpush1.msra.mxu0 %v253
    %867 = vmatprep.subr.mxu0 0.0
    %868 = vmatpush1.msra.mxu0 %v250
    %869 = vmatprep.subr.mxu0 0.0
    %870 = vmatpush1.msra.mxu0 %v247
    %871 = vmatprep.subr.mxu0 0.0
    %872 = vmatpush1.msra.mxu0 %v244
    %873 = vmatprep.subr.mxu0 0.0
    %874 = vmatpush1.msra.mxu0 %v241
    %875 = vmatprep.subr.mxu0 0.0
    %876 = vmatpush1.msra.mxu0 %v238
    %877 = vmatprep.subr.mxu0 0.0
    %878 = vmatpush1.msra.mxu0 %v235
    %879 = vmatprep.subr.mxu0 0.0
    %880 = vmatpush1.msra.mxu0 %v232
    %881 = vmatprep.subr.mxu0 0.0
    %882 = vmatpush1.msra.mxu0 %v229
    %883 = vmatprep.subr.mxu0 0.0
    %884 = vmatpush1.msra.mxu0 %v226
    %885 = vmatprep.subr.mxu0 0.0
    %886 = vmatpush1.msra.mxu0 %v223
    %887 = vmatprep.subr.mxu0 0.0
    %888 = vmatpush1.msra.mxu0 %v220
    %889 = vmatprep.subr.mxu0 0.0
    %890 = vmatpush1.msra.mxu0 %v217
    %891 = vmatprep.subr.mxu0 0.0
    %892 = vmatpush1.msra.mxu0 %v214
    %893 = vmatprep.subr.mxu0 0.0
    %894 = vmatpush1.msra.mxu0 %v211
    %895 = vmatprep.subr.mxu0 0.0
    %896 = vmatpush1.msra.mxu0 %v208
    %897 = vmatprep.subr.mxu0 0.0
    %898 = vmatpush2.msra.mxu0 %v301
    %899 = vmatprep.subr.mxu0 0.0
    %900 = vmatpush2.msra.mxu0 %v298
    %901 = vmatprep.subr.mxu0 0.0
    %902 = vmatpush2.msra.mxu0 %v295
    %903 = vmatprep.subr.mxu0 0.0
    %904 = vmatpush2.msra.mxu0 %v292
    %905 = vmatprep.subr.mxu0 0.0
    %906 = vmatpush2.msra.mxu0 %v289
    %907 = vmatprep.subr.mxu0 0.0
    %908 = vmatpush2.msra.mxu0 %v286
    %909 = vmatprep.subr.mxu0 0.0
    %910 = vmatpush2.msra.mxu0 %v283
    %911 = vmatprep.subr.mxu0 0.0
    %912 = vmatpush2.msra.mxu0 %v280
    %913 = vmatprep.subr.mxu0 0.0
    %914 = vmatpush2.msra.mxu0 %v277
    %915 = vmatprep.subr.mxu0 0.0
    %916 = vmatpush2.msra.mxu0 %v274
    %917 = vmatprep.subr.mxu0 0.0
    %918 = vmatpush2.msra.mxu0 %v271
    %919 = vmatprep.subr.mxu0 0.0
    %920 = vmatpush2.msra.mxu0 %v268
    %921 = vmatprep.subr.mxu0 0.0
    %922 = vmatpush2.msra.mxu0 %v265
    %923 = vmatprep.subr.mxu0 0.0
    %924 = vmatpush2.msra.mxu0 %v262
    %925 = vmatprep.subr.mxu0 0.0
    %926 = vmatpush2.msra.mxu0 %v259
    %927 = vmatprep.subr.mxu0 0.0
    %928 = vmatpush2.msra.mxu0 %v256
    %929 = vmatprep.mubr.f32.mxu0 %v105
    %930 = vmatmul.mubr.f32.gmra.mxu0 %v104
    %v931 = vpop.f32.mrf.mxu0
    %v932 = vadd.f32 %v862, %v931
    %v933 = vpop.f32.mrf.mxu0
    %934 = vdwg.mxu0
    %935 = vmatprep.subr.mxu0 0.0
    %936 = vmatpush1.msra.mxu0 %v349
    %937 = vmatprep.subr.mxu0 0.0
    %938 = vmatpush1.msra.mxu0 %v346
    %939 = vmatprep.subr.mxu0 0.0
    %940 = vmatpush1.msra.mxu0 %v343
    %941 = vmatprep.subr.mxu0 0.0
    %942 = vmatpush1.msra.mxu0 %v340
    %943 = vmatprep.subr.mxu0 0.0
    %944 = vmatpush1.msra.mxu0 %v337
    %945 = vmatprep.subr.mxu0 0.0
    %946 = vmatpush1.msra.mxu0 %v334
    %947 = vmatprep.subr.mxu0 0.0
    %948 = vmatpush1.msra.mxu0 %v331
    %949 = vmatprep.subr.mxu0 0.0
    %950 = vmatpush1.msra.mxu0 %v328
    %951 = vmatprep.subr.mxu0 0.0
    %952 = vmatpush1.msra.mxu0 %v325
    %953 = vmatprep.subr.mxu0 0.0
    %954 = vmatpush1.msra.mxu0 %v322
    %955 = vmatprep.subr.mxu0 0.0
    %956 = vmatpush1.msra.mxu0 %v319
    %957 = vmatprep.subr.mxu0 0.0
    %958 = vmatpush1.msra.mxu0 %v316
    %959 = vmatprep.subr.mxu0 0.0
    %960 = vmatpush1.msra.mxu0 %v313
    %961 = vmatprep.subr.mxu0 0.0
    %962 = vmatpush1.msra.mxu0 %v310
    %963 = vmatprep.subr.mxu0 0.0
    %964 = vmatpush1.msra.mxu0 %v307
    %965 = vmatprep.subr.mxu0 0.0
    %966 = vmatpush1.msra.mxu0 %v304
    %967 = vmatprep.subr.mxu0 0.0
    %968 = vmatpush2.msra.mxu0 %v397
    %969 = vmatprep.subr.mxu0 0.0
    %970 = vmatpush2.msra.mxu0 %v394
    %971 = vmatprep.subr.mxu0 0.0
    %972 = vmatpush2.msra.mxu0 %v391
    %973 = vmatprep.subr.mxu0 0.0
    %974 = vmatpush2.msra.mxu0 %v388
    %975 = vmatprep.subr.mxu0 0.0
    %976 = vmatpush2.msra.mxu0 %v385
    %977 = vmatprep.subr.mxu0 0.0
    %978 = vmatpush2.msra.mxu0 %v382
    %979 = vmatprep.subr.mxu0 0.0
    %980 = vmatpush2.msra.mxu0 %v379
    %981 = vmatprep.subr.mxu0 0.0
    %982 = vmatpush2.msra.mxu0 %v376
    %983 = vmatprep.subr.mxu0 0.0
    %984 = vmatpush2.msra.mxu0 %v373
    %985 = vmatprep.subr.mxu0 0.0
    %986 = vmatpush2.msra.mxu0 %v370
    %987 = vmatprep.subr.mxu0 0.0
    %988 = vmatpush2.msra.mxu0 %v367
    %989 = vmatprep.subr.mxu0 0.0
    %990 = vmatpush2.msra.mxu0 %v364
    %991 = vmatprep.subr.mxu0 0.0
    %992 = vmatpush2.msra.mxu0 %v361
    %993 = vmatprep.subr.mxu0 0.0
    %994 = vmatpush2.msra.mxu0 %v358
    %995 = vmatprep.subr.mxu0 0.0
    %996 = vmatpush2.msra.mxu0 %v355
    %997 = vmatprep.subr.mxu0 0.0
    %998 = vmatpush2.msra.mxu0 %v352
    %999 = vmatprep.mubr.f32.mxu0 %v107
    %1000 = vmatmul.mubr.f32.gmra.mxu0 %v106
    %v1001 = vpop.f32.mrf.mxu0
    %v1002 = vadd.f32 %v932, %v1001
    %v1003 = vpop.f32.mrf.mxu0
    %1004 = vdwg.mxu0
    %1005 = vmatprep.subr.mxu0 0.0
    %1006 = vmatpush1.msra.mxu0 %v445
    %1007 = vmatprep.subr.mxu0 0.0
    %1008 = vmatpush1.msra.mxu0 %v442
    %1009 = vmatprep.subr.mxu0 0.0
    %1010 = vmatpush1.msra.mxu0 %v439
    %1011 = vmatprep.subr.mxu0 0.0
    %1012 = vmatpush1.msra.mxu0 %v436
    %1013 = vmatprep.subr.mxu0 0.0
    %1014 = vmatpush1.msra.mxu0 %v433
    %1015 = vmatprep.subr.mxu0 0.0
    %1016 = vmatpush1.msra.mxu0 %v430
    %1017 = vmatprep.subr.mxu0 0.0
    %1018 = vmatpush1.msra.mxu0 %v427
    %1019 = vmatprep.subr.mxu0 0.0
    %1020 = vmatpush1.msra.mxu0 %v424
    %1021 = vmatprep.subr.mxu0 0.0
    %1022 = vmatpush1.msra.mxu0 %v421
    %1023 = vmatprep.subr.mxu0 0.0
    %1024 = vmatpush1.msra.mxu0 %v418
    %1025 = vmatprep.subr.mxu0 0.0
    %1026 = vmatpush1.msra.mxu0 %v415
    %1027 = vmatprep.subr.mxu0 0.0
    %1028 = vmatpush1.msra.mxu0 %v412
    %1029 = vmatprep.subr.mxu0 0.0
    %1030 = vmatpush1.msra.mxu0 %v409
    %1031 = vmatprep.subr.mxu0 0.0
    %1032 = vmatpush1.msra.mxu0 %v406
    %1033 = vmatprep.subr.mxu0 0.0
    %1034 = vmatpush1.msra.mxu0 %v403
    %1035 = vmatprep.subr.mxu0 0.0
    %1036 = vmatpush1.msra.mxu0 %v400
    %1037 = vmatprep.subr.mxu0 0.0
    %1038 = vmatpush2.msra.mxu0 %v493
    %1039 = vmatprep.subr.mxu0 0.0
    %1040 = vmatpush2.msra.mxu0 %v490
    %1041 = vmatprep.subr.mxu0 0.0
    %1042 = vmatpush2.msra.mxu0 %v487
    %1043 = vmatprep.subr.mxu0 0.0
    %1044 = vmatpush2.msra.mxu0 %v484
    %1045 = vmatprep.subr.mxu0 0.0
    %1046 = vmatpush2.msra.mxu0 %v481
    %1047 = vmatprep.subr.mxu0 0.0
    %1048 = vmatpush2.msra.mxu0 %v478
    %1049 = vmatprep.subr.mxu0 0.0
    %1050 = vmatpush2.msra.mxu0 %v475
    %1051 = vmatprep.subr.mxu0 0.0
    %1052 = vmatpush2.msra.mxu0 %v472
    %1053 = vmatprep.subr.mxu0 0.0
    %1054 = vmatpush2.msra.mxu0 %v469
    %1055 = vmatprep.subr.mxu0 0.0
    %1056 = vmatpush2.msra.mxu0 %v466
    %1057 = vmatprep.subr.mxu0 0.0
    %1058 = vmatpush2.msra.mxu0 %v463
    %1059 = vmatprep.subr.mxu0 0.0
    %1060 = vmatpush2.msra.mxu0 %v460
    %1061 = vmatprep.subr.mxu0 0.0
    %1062 = vmatpush2.msra.mxu0 %v457
    %1063 = vmatprep.subr.mxu0 0.0
    %1064 = vmatpush2.msra.mxu0 %v454
    %1065 = vmatprep.subr.mxu0 0.0
    %1066 = vmatpush2.msra.mxu0 %v451
    %1067 = vmatprep.subr.mxu0 0.0
    %1068 = vmatpush2.msra.mxu0 %v448
    %1069 = vmatprep.mubr.f32.mxu0 %v109
    %1070 = vmatmul.mubr.f32.gmra.mxu0 %v108
    %v1071 = vpop.f32.mrf.mxu0
    %v1072 = vadd.f32 %v1002, %v1071
    %v1073 = vpop.f32.mrf.mxu0
    %1074 = vdwg.mxu0
    %v1075 = vmax.f32 %v791, 0.0
    %v1076 = vmax.f32 %v793, 0.0
    %v1077 = vmax.f32 %v1072, 0.0
    %v1078 = vld [vmem:[#allocation6] sm:$0xff]
    %v1079 = vld [vmem:[#allocation6 + $0x8] sm:$0xff]
    %v1080 = vld [vmem:[#allocation6 + $0x10] sm:$0xff]
    %v1081 = vld [vmem:[#allocation6 + $0x18] sm:$0xff]
    %v1082 = vld [vmem:[#allocation6 + $0x20] sm:$0xff]
    %v1083 = vld [vmem:[#allocation6 + $0x28] sm:$0xff]
    %v1084 = vld [vmem:[#allocation6 + $0x30] sm:$0xff]
    %v1085 = vld [vmem:[#allocation6 + $0x38] sm:$0xff]
    %v1086 = vld [vmem:[#allocation6 + $0x40] sm:$0xff]
    %v1087 = vld [vmem:[#allocation6 + $0x48] sm:$0xff]
    %v1088 = vld [vmem:[#allocation6 + $0x50] sm:$0xff]
    %v1089 = vld [vmem:[#allocation6 + $0x58] sm:$0xff]
    %v1090 = vld [vmem:[#allocation6 + $0x60] sm:$0xff]
    %v1091 = vld [vmem:[#allocation6 + $0x68] sm:$0xff]
    %v1092 = vld [vmem:[#allocation6 + $0x70] sm:$0xff]
    %v1093 = vld [vmem:[#allocation6 + $0x78] sm:$0xff]
    %v1094 = vld [vmem:[#allocation6 + $0x80] sm:$0xff]
    %v1095 = vld [vmem:[#allocation6 + $0x88] sm:$0xff]
    %v1096 = vld [vmem:[#allocation6 + $0x90] sm:$0xff]
    %v1097 = vld [vmem:[#allocation6 + $0x98] sm:$0xff]
    %v1098 = vld [vmem:[#allocation6 + $0xa0] sm:$0xff]
    %v1099 = vld [vmem:[#allocation6 + $0xa8] sm:$0xff]
    %v1100 = vld [vmem:[#allocation6 + $0xb0] sm:$0xff]
    %v1101 = vld [vmem:[#allocation6 + $0xb8] sm:$0xff]
    %v1102 = vld [vmem:[#allocation6 + $0xc0] sm:$0xff]
    %v1103 = vld [vmem:[#allocation6 + $0xc8] sm:$0xff]
    %v1104 = vld [vmem:[#allocation6 + $0xd0] sm:$0xff]
    %v1105 = vld [vmem:[#allocation6 + $0xd8] sm:$0xff]
    %v1106 = vld [vmem:[#allocation6 + $0xe0] sm:$0xff]
    %v1107 = vld [vmem:[#allocation6 + $0xe8] sm:$0xff]
    %v1108 = vld [vmem:[#allocation6 + $0xf0] sm:$0xff]
    %v1109 = vld [vmem:[#allocation6 + $0xf8] sm:$0xff]
    %v1110 = vld [vmem:[#allocation6 + $0x100] sm:$0xff]
    %v1111 = vld [vmem:[#allocation6 + $0x108] sm:$0xff]
    %v1112 = vld [vmem:[#allocation6 + $0x110] sm:$0xff]
    %v1113 = vld [vmem:[#allocation6 + $0x118] sm:$0xff]
    %v1114 = vld [vmem:[#allocation6 + $0x120] sm:$0xff]
    %v1115 = vld [vmem:[#allocation6 + $0x128] sm:$0xff]
    %v1116 = vld [vmem:[#allocation6 + $0x130] sm:$0xff]
    %v1117 = vld [vmem:[#allocation6 + $0x138] sm:$0xff]
    %v1118 = vld [vmem:[#allocation6 + $0x140] sm:$0xff]
    %v1119 = vld [vmem:[#allocation6 + $0x148] sm:$0xff]
    %v1120 = vld [vmem:[#allocation6 + $0x150] sm:$0xff]
    %v1121 = vld [vmem:[#allocation6 + $0x158] sm:$0xff]
    %v1122 = vld [vmem:[#allocation6 + $0x160] sm:$0xff]
    %v1123 = vld [vmem:[#allocation6 + $0x168] sm:$0xff]
    %v1124 = vld [vmem:[#allocation6 + $0x170] sm:$0xff]
    %v1125 = vld [vmem:[#allocation6 + $0x178] sm:$0xff]
    %v1126 = vld [vmem:[#allocation6 + $0x180] sm:$0xff]
    %v1127 = vld [vmem:[#allocation6 + $0x188] sm:$0xff]
    %v1128 = vld [vmem:[#allocation6 + $0x190] sm:$0xff]
    %v1129 = vld [vmem:[#allocation6 + $0x198] sm:$0xff]
    %v1130 = vld [vmem:[#allocation6 + $0x1a0] sm:$0xff]
    %v1131 = vld [vmem:[#allocation6 + $0x1a8] sm:$0xff]
    %v1132 = vld [vmem:[#allocation6 + $0x1b0] sm:$0xff]
    %v1133 = vld [vmem:[#allocation6 + $0x1b8] sm:$0xff]
    %v1134 = vld [vmem:[#allocation6 + $0x1c0] sm:$0xff]
    %v1135 = vld [vmem:[#allocation6 + $0x1c8] sm:$0xff]
    %v1136 = vld [vmem:[#allocation6 + $0x1d0] sm:$0xff]
    %v1137 = vld [vmem:[#allocation6 + $0x1d8] sm:$0xff]
    %v1138 = vld [vmem:[#allocation6 + $0x1e0] sm:$0xff]
    %v1139 = vld [vmem:[#allocation6 + $0x1e8] sm:$0xff]
    %v1140 = vld [vmem:[#allocation6 + $0x1f0] sm:$0xff]
    %v1141 = vld [vmem:[#allocation6 + $0x1f8] sm:$0xff]
    %v1142 = vld [vmem:[#allocation6 + $0x200] sm:$0xff]
    %v1143 = vld [vmem:[#allocation6 + $0x208] sm:$0xff]
    %v1144 = vld [vmem:[#allocation6 + $0x210] sm:$0xff]
    %v1145 = vld [vmem:[#allocation6 + $0x218] sm:$0xff]
    %v1146 = vld [vmem:[#allocation6 + $0x220] sm:$0xff]
    %v1147 = vld [vmem:[#allocation6 + $0x228] sm:$0xff]
    %v1148 = vld [vmem:[#allocation6 + $0x230] sm:$0xff]
    %v1149 = vld [vmem:[#allocation6 + $0x238] sm:$0xff]
    %v1150 = vld [vmem:[#allocation6 + $0x240] sm:$0xff]
    %v1151 = vld [vmem:[#allocation6 + $0x248] sm:$0xff]
    %v1152 = vld [vmem:[#allocation6 + $0x250] sm:$0xff]
    %v1153 = vld [vmem:[#allocation6 + $0x258] sm:$0xff]
    %v1154 = vld [vmem:[#allocation6 + $0x260] sm:$0xff]
    %v1155 = vld [vmem:[#allocation6 + $0x268] sm:$0xff]
    %v1156 = vld [vmem:[#allocation6 + $0x270] sm:$0xff]
    %v1157 = vld [vmem:[#allocation6 + $0x278] sm:$0xff]
    %v1158 = vld [vmem:[#allocation6 + $0x280] sm:$0xff]
    %v1159 = vld [vmem:[#allocation6 + $0x288] sm:$0xff]
    %v1160 = vld [vmem:[#allocation6 + $0x290] sm:$0xff]
    %v1161 = vld [vmem:[#allocation6 + $0x298] sm:$0xff]
    %v1162 = vld [vmem:[#allocation6 + $0x2a0] sm:$0xff]
    %v1163 = vld [vmem:[#allocation6 + $0x2a8] sm:$0xff]
    %v1164 = vld [vmem:[#allocation6 + $0x2b0] sm:$0xff]
    %v1165 = vld [vmem:[#allocation6 + $0x2b8] sm:$0xff]
    %v1166 = vld [vmem:[#allocation6 + $0x2c0] sm:$0xff]
    %v1167 = vld [vmem:[#allocation6 + $0x2c8] sm:$0xff]
    %v1168 = vld [vmem:[#allocation6 + $0x2d0] sm:$0xff]
    %v1169 = vld [vmem:[#allocation6 + $0x2d8] sm:$0xff]
    %v1170 = vld [vmem:[#allocation6 + $0x2e0] sm:$0xff]
    %v1171 = vld [vmem:[#allocation6 + $0x2e8] sm:$0xff]
    %v1172 = vld [vmem:[#allocation6 + $0x2f0] sm:$0xff]
    %v1173 = vld [vmem:[#allocation6 + $0x2f8] sm:$0xff]
    %v1174 = vld [vmem:[#allocation7] sm:$0x3]
    %v1176 = vlaneseq
    %v1177 = vshrl.u32 %v1176, 7
    %v1178 = vsub.s32 0, %v1177
    %v1179 = vrot.slane %v1174, %v1178
    %v1180 = vlaneseq
    %v1181 = vshrl.u32 %v1180, 7
    %v1182 = vsub.s32 1, %v1181
    %v1183 = vrot.slane %v1174, %v1182
    %1186 = vmatprep.subr.mxu0 %v1109
    %1187 = vmatpush1.msra.mxu0 %v1108
    %1188 = vmatprep.subr.mxu0 %v1107
    %1189 = vmatpush1.msra.mxu0 %v1106
    %1190 = vmatprep.subr.mxu0 %v1105
    %1191 = vmatpush1.msra.mxu0 %v1104
    %1192 = vmatprep.subr.mxu0 %v1103
    %1193 = vmatpush1.msra.mxu0 %v1102
    %1194 = vmatprep.subr.mxu0 %v1101
    %1195 = vmatpush1.msra.mxu0 %v1100
    %1196 = vmatprep.subr.mxu0 %v1099
    %1197 = vmatpush1.msra.mxu0 %v1098
    %1198 = vmatprep.subr.mxu0 %v1097
    %1199 = vmatpush1.msra.mxu0 %v1096
    %1200 = vmatprep.subr.mxu0 %v1095
    %1201 = vmatpush1.msra.mxu0 %v1094
    %1202 = vmatprep.subr.mxu0 %v1093
    %1203 = vmatpush1.msra.mxu0 %v1092
    %1204 = vmatprep.subr.mxu0 %v1091
    %1205 = vmatpush1.msra.mxu0 %v1090
    %1206 = vmatprep.subr.mxu0 %v1089
    %1207 = vmatpush1.msra.mxu0 %v1088
    %1208 = vmatprep.subr.mxu0 %v1087
    %1209 = vmatpush1.msra.mxu0 %v1086
    %1210 = vmatprep.subr.mxu0 %v1085
    %1211 = vmatpush1.msra.mxu0 %v1084
    %1212 = vmatprep.subr.mxu0 %v1083
    %1213 = vmatpush1.msra.mxu0 %v1082
    %1214 = vmatprep.subr.mxu0 %v1081
    %1215 = vmatpush1.msra.mxu0 %v1080
    %1216 = vmatprep.subr.mxu0 %v1079
    %1217 = vmatpush1.msra.mxu0 %v1078
    %1218 = vmatprep.subr.mxu0 %v1141
    %1219 = vmatpush2.msra.mxu0 %v1140
    %1220 = vmatprep.subr.mxu0 %v1139
    %1221 = vmatpush2.msra.mxu0 %v1138
    %1222 = vmatprep.subr.mxu0 %v1137
    %1223 = vmatpush2.msra.mxu0 %v1136
    %1224 = vmatprep.subr.mxu0 %v1135
    %1225 = vmatpush2.msra.mxu0 %v1134
    %1226 = vmatprep.subr.mxu0 %v1133
    %1227 = vmatpush2.msra.mxu0 %v1132
    %1228 = vmatprep.subr.mxu0 %v1131
    %1229 = vmatpush2.msra.mxu0 %v1130
    %1230 = vmatprep.subr.mxu0 %v1129
    %1231 = vmatpush2.msra.mxu0 %v1128
    %1232 = vmatprep.subr.mxu0 %v1127
    %1233 = vmatpush2.msra.mxu0 %v1126
    %1234 = vmatprep.subr.mxu0 %v1125
    %1235 = vmatpush2.msra.mxu0 %v1124
    %1236 = vmatprep.subr.mxu0 %v1123
    %1237 = vmatpush2.msra.mxu0 %v1122
    %1238 = vmatprep.subr.mxu0 %v1121
    %1239 = vmatpush2.msra.mxu0 %v1120
    %1240 = vmatprep.subr.mxu0 %v1119
    %1241 = vmatpush2.msra.mxu0 %v1118
    %1242 = vmatprep.subr.mxu0 %v1117
    %1243 = vmatpush2.msra.mxu0 %v1116
    %1244 = vmatprep.subr.mxu0 %v1115
    %1245 = vmatpush2.msra.mxu0 %v1114
    %1246 = vmatprep.subr.mxu0 %v1113
    %1247 = vmatpush2.msra.mxu0 %v1112
    %1248 = vmatprep.subr.mxu0 %v1111
    %1249 = vmatpush2.msra.mxu0 %v1110
    %1250 = vmatprep.mubr.f32.mxu0 %v1076
    %1251 = vmatmul.mubr.f32.gmra.mxu0 %v1075
    %v1252 = vpop.f32.mrf.mxu0
    %v1253 = vadd.f32 %v1179, %v1252
    %v1254 = vpop.f32.mrf.mxu0
    %v1255 = vadd.f32 %v1183, %v1254
    %1256 = vdwg.mxu0
    %1257 = vmatprep.subr.mxu0 %v1173
    %1258 = vmatpush1.msra.mxu0 %v1172
    %1259 = vmatprep.subr.mxu0 %v1171
    %1260 = vmatpush1.msra.mxu0 %v1170
    %1261 = vmatprep.subr.mxu0 %v1169
    %1262 = vmatpush1.msra.mxu0 %v1168
    %1263 = vmatprep.subr.mxu0 %v1167
    %1264 = vmatpush1.msra.mxu0 %v1166
    %1265 = vmatprep.subr.mxu0 %v1165
    %1266 = vmatpush1.msra.mxu0 %v1164
    %1267 = vmatprep.subr.mxu0 %v1163
    %1268 = vmatpush1.msra.mxu0 %v1162
    %1269 = vmatprep.subr.mxu0 %v1161
    %1270 = vmatpush1.msra.mxu0 %v1160
    %1271 = vmatprep.subr.mxu0 %v1159
    %1272 = vmatpush1.msra.mxu0 %v1158
    %1273 = vmatprep.subr.mxu0 %v1157
    %1274 = vmatpush1.msra.mxu0 %v1156
    %1275 = vmatprep.subr.mxu0 %v1155
    %1276 = vmatpush1.msra.mxu0 %v1154
    %1277 = vmatprep.subr.mxu0 %v1153
    %1278 = vmatpush1.msra.mxu0 %v1152
    %1279 = vmatprep.subr.mxu0 %v1151
    %1280 = vmatpush1.msra.mxu0 %v1150
    %1281 = vmatprep.subr.mxu0 %v1149
    %1282 = vmatpush1.msra.mxu0 %v1148
    %1283 = vmatprep.subr.mxu0 %v1147
    %1284 = vmatpush1.msra.mxu0 %v1146
    %1285 = vmatprep.subr.mxu0 %v1145
    %1286 = vmatpush1.msra.mxu0 %v1144
    %1287 = vmatprep.subr.mxu0 %v1143
    %1288 = vmatpush1.msra.mxu0 %v1142
    %1289 = vmatprep.subr.mxu0 0.0
    %1290 = vmatpush2.msra.mxu0 0.0
    %1291 = vmatprep.subr.mxu0 0.0
    %1292 = vmatpush2.msra.mxu0 0.0
    %1293 = vmatprep.subr.mxu0 0.0
    %1294 = vmatpush2.msra.mxu0 0.0
    %1295 = vmatprep.subr.mxu0 0.0
    %1296 = vmatpush2.msra.mxu0 0.0
    %1297 = vmatprep.subr.mxu0 0.0
    %1298 = vmatpush2.msra.mxu0 0.0
    %1299 = vmatprep.subr.mxu0 0.0
    %1300 = vmatpush2.msra.mxu0 0.0
    %1301 = vmatprep.subr.mxu0 0.0
    %1302 = vmatpush2.msra.mxu0 0.0
    %1303 = vmatprep.subr.mxu0 0.0
    %1304 = vmatpush2.msra.mxu0 0.0
    %1305 = vmatprep.subr.mxu0 0.0
    %1306 = vmatpush2.msra.mxu0 0.0
    %1307 = vmatprep.subr.mxu0 0.0
    %1308 = vmatpush2.msra.mxu0 0.0
    %1309 = vmatprep.subr.mxu0 0.0
    %1310 = vmatpush2.msra.mxu0 0.0
    %1311 = vmatprep.subr.mxu0 0.0
    %1312 = vmatpush2.msra.mxu0 0.0
    %1313 = vmatprep.subr.mxu0 0.0
    %1314 = vmatpush2.msra.mxu0 0.0
    %1315 = vmatprep.subr.mxu0 0.0
    %1316 = vmatpush2.msra.mxu0 0.0
    %1317 = vmatprep.subr.mxu0 0.0
    %1318 = vmatpush2.msra.mxu0 0.0
    %1319 = vmatprep.subr.mxu0 0.0
    %1320 = vmatpush2.msra.mxu0 0.0
    %1321 = vmatprep.mubr.f32.mxu0 0.0
    %1322 = vmatmul.mubr.f32.gmra.mxu0 %v1077
    %v1323 = vpop.f32.mrf.mxu0
    %v1324 = vadd.f32 %v1253, %v1323
    %v1325 = vpop.f32.mrf.mxu0
    %v1326 = vadd.f32 %v1255, %v1325
    %1327 = vdwg.mxu0
    %v1328 = vmax.f32 %v1324, 0.0
    %v1329 = vsub.f32 0.0, %v1326
    %v1330 = vmul.f32 %v1329, 1.442695
    %v1331 = vpow.pop %v1330
    %v1332 = vadd.f32 %v1331, 1.0
    %v1333 = vrcp.pop %v1332
    %v1334 = vmul.f32 1.0, %v1333
    %v1335 = vld [vmem:[#allocation9] sm:$0xff]
    %v1336 = vld [vmem:[#allocation9 + $0x8] sm:$0xff]
    %v1337 = vld [vmem:[#allocation9 + $0x10] sm:$0xff]
    %v1338 = vld [vmem:[#allocation9 + $0x18] sm:$0xff]
    %v1339 = vld [vmem:[#allocation9 + $0x20] sm:$0xff]
    %v1340 = vld [vmem:[#allocation9 + $0x28] sm:$0xff]
    %v1341 = vld [vmem:[#allocation9 + $0x30] sm:$0xff]
    %v1342 = vld [vmem:[#allocation9 + $0x38] sm:$0xff]
    %v1343 = vld [vmem:[#allocation9 + $0x40] sm:$0xff]
    %v1344 = vld [vmem:[#allocation9 + $0x48] sm:$0xff]
    %v1345 = vld [vmem:[#allocation9 + $0x50] sm:$0xff]
    %v1346 = vld [vmem:[#allocation9 + $0x58] sm:$0xff]
    %v1347 = vld [vmem:[#allocation9 + $0x60] sm:$0xff]
    %v1348 = vld [vmem:[#allocation9 + $0x68] sm:$0xff]
    %v1349 = vld [vmem:[#allocation9 + $0x70] sm:$0xff]
    %v1350 = vld [vmem:[#allocation9 + $0x78] sm:$0xff]
    %v1351 = vld [vmem:[#allocation9 + $0x80] sm:$0xff]
    %v1352 = vld [vmem:[#allocation9 + $0x88] sm:$0xff]
    %v1353 = vld [vmem:[#allocation9 + $0x90] sm:$0xff]
    %v1354 = vld [vmem:[#allocation9 + $0x98] sm:$0xff]
    %v1355 = vld [vmem:[#allocation9 + $0xa0] sm:$0xff]
    %v1356 = vld [vmem:[#allocation9 + $0xa8] sm:$0xff]
    %v1357 = vld [vmem:[#allocation9 + $0xb0] sm:$0xff]
    %v1358 = vld [vmem:[#allocation9 + $0xb8] sm:$0xff]
    %v1359 = vld [vmem:[#allocation9 + $0xc0] sm:$0xff]
    %v1360 = vld [vmem:[#allocation9 + $0xc8] sm:$0xff]
    %v1361 = vld [vmem:[#allocation9 + $0xd0] sm:$0xff]
    %v1362 = vld [vmem:[#allocation9 + $0xd8] sm:$0xff]
    %v1363 = vld [vmem:[#allocation9 + $0xe0] sm:$0xff]
    %v1364 = vld [vmem:[#allocation9 + $0xe8] sm:$0xff]
    %v1365 = vld [vmem:[#allocation9 + $0xf0] sm:$0xff]
    %v1366 = vld [vmem:[#allocation9 + $0xf8] sm:$0xff]
    %v1367 = vld [vmem:[#allocation10] sm:$0x3]
    %v1369 = vlaneseq
    %v1370 = vshrl.u32 %v1369, 7
    %v1371 = vsub.s32 0, %v1370
    %v1372 = vrot.slane %v1367, %v1371
    %v1373 = vlaneseq
    %v1374 = vshrl.u32 %v1373, 7
    %v1375 = vsub.s32 1, %v1374
    %v1376 = vrot.slane %v1367, %v1375
    %1379 = vmatprep.subr.mxu0 %v1366
    %1380 = vmatpush1.msra.mxu0 %v1365
    %1381 = vmatprep.subr.mxu0 %v1364
    %1382 = vmatpush1.msra.mxu0 %v1363
    %1383 = vmatprep.subr.mxu0 %v1362
    %1384 = vmatpush1.msra.mxu0 %v1361
    %1385 = vmatprep.subr.mxu0 %v1360
    %1386 = vmatpush1.msra.mxu0 %v1359
    %1387 = vmatprep.subr.mxu0 %v1358
    %1388 = vmatpush1.msra.mxu0 %v1357
    %1389 = vmatprep.subr.mxu0 %v1356
    %1390 = vmatpush1.msra.mxu0 %v1355
    %1391 = vmatprep.subr.mxu0 %v1354
    %1392 = vmatpush1.msra.mxu0 %v1353
    %1393 = vmatprep.subr.mxu0 %v1352
    %1394 = vmatpush1.msra.mxu0 %v1351
    %1395 = vmatprep.subr.mxu0 %v1350
    %1396 = vmatpush1.msra.mxu0 %v1349
    %1397 = vmatprep.subr.mxu0 %v1348
    %1398 = vmatpush1.msra.mxu0 %v1347
    %1399 = vmatprep.subr.mxu0 %v1346
    %1400 = vmatpush1.msra.mxu0 %v1345
    %1401 = vmatprep.subr.mxu0 %v1344
    %1402 = vmatpush1.msra.mxu0 %v1343
    %1403 = vmatprep.subr.mxu0 %v1342
    %1404 = vmatpush1.msra.mxu0 %v1341
    %1405 = vmatprep.subr.mxu0 %v1340
    %1406 = vmatpush1.msra.mxu0 %v1339
    %1407 = vmatprep.subr.mxu0 %v1338
    %1408 = vmatpush1.msra.mxu0 %v1337
    %1409 = vmatprep.subr.mxu0 %v1336
    %1410 = vmatpush1.msra.mxu0 %v1335
    %1411 = vmatprep.subr.mxu0 0.0
    %1412 = vmatpush2.msra.mxu0 0.0
    %1413 = vmatprep.subr.mxu0 0.0
    %1414 = vmatpush2.msra.mxu0 0.0
    %1415 = vmatprep.subr.mxu0 0.0
    %1416 = vmatpush2.msra.mxu0 0.0
    %1417 = vmatprep.subr.mxu0 0.0
    %1418 = vmatpush2.msra.mxu0 0.0
    %1419 = vmatprep.subr.mxu0 0.0
    %1420 = vmatpush2.msra.mxu0 0.0
    %1421 = vmatprep.subr.mxu0 0.0
    %1422 = vmatpush2.msra.mxu0 0.0
    %1423 = vmatprep.subr.mxu0 0.0
    %1424 = vmatpush2.msra.mxu0 0.0
    %1425 = vmatprep.subr.mxu0 0.0
    %1426 = vmatpush2.msra.mxu0 0.0
    %1427 = vmatprep.subr.mxu0 0.0
    %1428 = vmatpush2.msra.mxu0 0.0
    %1429 = vmatprep.subr.mxu0 0.0
    %1430 = vmatpush2.msra.mxu0 0.0
    %1431 = vmatprep.subr.mxu0 0.0
    %1432 = vmatpush2.msra.mxu0 0.0
    %1433 = vmatprep.subr.mxu0 0.0
    %1434 = vmatpush2.msra.mxu0 0.0
    %1435 = vmatprep.subr.mxu0 0.0
    %1436 = vmatpush2.msra.mxu0 0.0
    %1437 = vmatprep.subr.mxu0 0.0
    %1438 = vmatpush2.msra.mxu0 0.0
    %1439 = vmatprep.subr.mxu0 0.0
    %1440 = vmatpush2.msra.mxu0 0.0
    %1441 = vmatprep.subr.mxu0 0.0
    %1442 = vmatpush2.msra.mxu0 0.0
    %1443 = vmatprep.mubr.f32.mxu0 0.0
    %1444 = vmatmul.mubr.f32.gmra.mxu0 %v1328
    %v1445 = vpop.f32.mrf.mxu0
    %v1446 = vadd.f32 %v1372, %v1445
    %v1447 = vpop.f32.mrf.mxu0
    %v1448 = vadd.f32 %v1376, %v1447
    %1449 = vdwg.mxu0
    %v1450 = vmul.f32 %v1334, %v1446
    %v1451 = vsub.f32 1.0, %v1334
    %v1452 = vmul.f32 %v1451, %v1448
    %v1453 = vadd.f32 %v1450, %v1452
    %1454 = vst [vmem:[%s7] sm:$0xff] %v1453
    // Predicated region
    $region54: #{moe_forward.1} parent=1 // pred_check
      _
    $region55: #{moe_forward.1} parent=1 // pred_check_branch
      %1456 = sbr.rel (0) target = $region57
    $region56: #{moe_forward.1} parent=1 // pred_region
      _
    $region57: #{moe_forward.1} parent=1 // pred_fallthru
      _
    // Predicated region
    $region58: #{moe_forward.1} parent=1 // pred_check
      _
    $region59: #{moe_forward.1} parent=1 // pred_check_branch
      %1458 = sbr.rel (0) target = $region61
    $region60: #{moe_forward.1} parent=1 // pred_region
      _
    $region61: #{moe_forward.1} parent=1 // pred_fallthru
      _
    %1459 = vsyncpa [#allocation3], 1
    %1460 = vsyncpa [#allocation5], 1
    %1461 = vsyncpa [#allocation8], 1
    %1462 = vsyncpa [#allocation11], 1

</llo_original>
